<compile_context>
chip_gen: v7x
topology: tpu7x:2x2x1
jax: 0.10.0
libtpu: 0.0.40
codegen_flags: <defaults>
</compile_context>

<pallas_src>
import jax
import jax.numpy as jnp
from jax.experimental import pallas as pl
from jax.experimental.pallas import tpu as pltpu


_TARGET_BLOCK_BYTES = 6 << 20  # ~6 MiB of x per grid step (review: 6-8 MiB v7x, 4-8 MiB v6e/v5e)


def _cdiv(a, b):
    return -(-a // b)


# ----------------------------------------------------------------------------
# Kernels
# ----------------------------------------------------------------------------
def _se_fused_kernel(x_ref, w1t_ref, b1_ref, w2t_ref, b2_ref, o_ref):
    """Single-pass kernel: block holds the full (C, T) slab of Bt batch rows."""
    inv_t = 1.0 / x_ref.shape[-1]

    # Squeeze: time-mean accumulated in f32 (no live f32 copy of the block).
    m = jnp.sum(x_ref[...], axis=-1, dtype=jnp.float32) * inv_t              # (Bt, C)

    # Excitation MLP (tiny, f32, MXU): (Bt,C)@(C,D) -> relu -> (Bt,D)@(D,C) -> sigmoid.
    h = jnp.dot(m, w1t_ref[...], preferred_element_type=jnp.float32) + b1_ref[...]
    h = jnp.maximum(h, 0.0)
    s = jnp.dot(h, w2t_ref[...], preferred_element_type=jnp.float32) + b2_ref[...]
    s = jax.nn.sigmoid(s)                                                    # (Bt, C)

    # Scale every time step of each channel; multiply in the native dtype.
    o_ref[...] = x_ref[...] * s.astype(o_ref.dtype)[:, :, None]


def _make_scale_kernel(true_t, t_block, needs_mask):
    """Two-pass fallback, pass A: accumulate the time-sum over T tiles, then
    compute the sigmoid scale on the last T step."""

    def kernel(x_ref, w1t_ref, b1_ref, w2t_ref, b2_ref, s_ref, acc_ref):
        t = pl.program_id(1)

        @pl.when(t == 0)
        def _():
            acc_ref[...] = jnp.zeros_like(acc_ref)

        xb = x_ref[...]
        if needs_mask:
            # Ragged last T block: zero the out-of-range (padded) time columns.
            col = jax.lax.broadcasted_iota(jnp.int32, xb.shape, dimension=xb.ndim - 1)
            xb = jnp.where((t * t_block + col) < true_t, xb, 0)
        acc_ref[...] += jnp.sum(xb, axis=-1, dtype=jnp.float32)

        @pl.when(t == pl.num_programs(1) - 1)
        def _():
            m = acc_ref[...] * (1.0 / true_t)
            h = jnp.dot(m, w1t_ref[...], preferred_element_type=jnp.float32) + b1_ref[...]
            h = jnp.maximum(h, 0.0)
            s = jnp.dot(h, w2t_ref[...], preferred_element_type=jnp.float32) + b2_ref[...]
            s_ref[...] = jax.nn.sigmoid(s)

    return kernel


def _se_apply_kernel(x_ref, s_ref, o_ref):
    """Two-pass fallback, pass B: apply the per-(batch, channel) scale."""
    o_ref[...] = x_ref[...] * s_ref[...].astype(o_ref.dtype)[:, :, None]


# ----------------------------------------------------------------------------
# Tiling / VMEM heuristics
# ----------------------------------------------------------------------------
def _vmem_budget():
    """Scoped-VMEM cap: stay well below physical VMEM (64 MiB/TC on v7x)."""
    try:
        info = pltpu.get_tpu_info()
        phys = int(getattr(info, "vmem_capacity_bytes", 64 << 20))
    except Exception:
        phys = 64 << 20                       # conservative: assume v7x-sized VMEM
    return min(phys - (16 << 20), 96 << 20)   # >=16 MiB headroom for compiler scratch


def _choose_block_batch(B, C, T, itemsize, block_budget):
    """Pick the per-step batch tile Bt for the single-pass kernel.
    Returns 0 if even Bt=1 cannot be double-buffered (caller uses the T-tiled path)."""
    per_b = max(1, C * T * itemsize)
    bt_vmem = block_budget // (4 * per_b)     # 2x input + 2x output buffers
    if bt_vmem < 1:
        return 0

    bt = min(bt_vmem, max(1, _TARGET_BLOCK_BYTES // per_b), B, 1024)
    if bt >= 8:
        bt = (bt // 8) * 8                    # fill vreg sublanes when affordable

    # Give each TensorCore >= 2 grid steps when the batch allows (v7x megacore:
    # 2 cores x >= 2 steps each so input DMA / compute / writeback overlap).
    if _cdiv(B, bt) < 2 and B >= 16:
        bt = max(8, (B // 2) // 8 * 8)
    if _cdiv(B, bt) < 4 and B >= 32:
        bt = max(8, (B // 4) // 8 * 8)

    # Prefer a divisor of B (no ragged last block -> no masked stores), as long
    # as it does not shrink the tile by more than 2x.
    for d in range(bt, 0, -1):
        if B % d == 0:
            if 2 * d >= bt:
                bt = d
            break
    return max(1, min(bt, B))


def _choose_fallback_tiles(B, C, T, itemsize, block_budget):
    """Tiles for the T-tiled two-pass path (per-batch-element slab too big for VMEM)."""
    bt = B if B < 8 else 8

    def fits(bt_, tt_):
        return 4 * bt_ * C * tt_ * itemsize <= block_budget

    if T <= 128:
        tt = T
    else:
        tt = min(T, max(1, _TARGET_BLOCK_BYTES // max(1, bt * C * itemsize)))
        if tt < T:
            tt = max(128, (tt // 128) * 128)  # lane-dense T tile
    while tt > 128 and not fits(bt, tt):
        tt = max(128, (tt // 2) // 128 * 128)
    while bt > 1 and not fits(bt, tt):
        bt = max(1, bt // 2)
    # TODO(synk): if even a (1, C, 128) block exceeds the VMEM budget, the channel
    # axis would need tiling too (not required for realistic ECAPA channel counts).
    return bt, tt


# ----------------------------------------------------------------------------
# Wrappers
# ----------------------------------------------------------------------------
def prepare_se_params(w1, b1, w2, b2):
    """One-time parameter prep (hoisted out of the per-call path): transpose the
    PyTorch-Linear weights to row-major matmul layout and cast to f32."""
    D, C = w1.shape
    return (
        jnp.asarray(w1, jnp.float32).T,            # (C, D)
        jnp.asarray(b1, jnp.float32).reshape(1, D),
        jnp.asarray(w2, jnp.float32).T,            # (D, C)
        jnp.asarray(b2, jnp.float32).reshape(1, C),
    )


def _se_fused(x, w1t, b1r, w2t, b2r, bt, vmem_cap):
    B, C, T = x.shape
    D = w1t.shape[1]
    itemsize = jnp.dtype(x.dtype).itemsize
    grid = _cdiv(B, bt)

    block_bytes = bt * C * T * itemsize
    weight_bytes = (C * D + D * C + C + D) * 4
    vmem_limit = int(min(vmem_cap, 4 * block_bytes + 2 * weight_bytes + (4 << 20)))
    vmem_limit = max(vmem_limit, 16 << 20)

    return pl.pallas_call(
        _se_fused_kernel,
        out_shape=jax.ShapeDtypeStruct((B, C, T), x.dtype),
        grid_spec=pltpu.PrefetchScalarGridSpec(
            num_scalar_prefetch=0,
            grid=(grid,),
            in_specs=[
                pl.BlockSpec((bt, C, T), lambda b: (b, 0, 0)),   # x: Bt batch rows, full (C,T)
                pl.BlockSpec((C, D), lambda b: (0, 0)),          # W1^T (resident)
                pl.BlockSpec((1, D), lambda b: (0, 0)),          # b1
                pl.BlockSpec((D, C), lambda b: (0, 0)),          # W2^T
                pl.BlockSpec((1, C), lambda b: (0, 0)),          # b2
            ],
            out_specs=pl.BlockSpec((bt, C, T), lambda b: (b, 0, 0)),
        ),
        compiler_params=pltpu.CompilerParams(
            dimension_semantics=("parallel",),
            vmem_limit_bytes=vmem_limit,
        ),
    )(x, w1t, b1r, w2t, b2r)


def _se_two_pass(x, w1t, b1r, w2t, b2r, block_budget, vmem_cap, t_block=None):
    """Fallback for huge C*T slabs: pass A reduces over T tiles and produces the
    sigmoid scale; pass B applies it (one extra HBM read of x)."""
    B, C, T = x.shape
    D = w1t.shape[1]
    itemsize = jnp.dtype(x.dtype).itemsize

    bt, tt = _choose_fallback_tiles(B, C, T, itemsize, block_budget)
    if t_block is not None:
        tt = int(t_block)
    bg, tg = _cdiv(B, bt), _cdiv(T, tt)
    needs_mask = (T % tt) != 0

    block_bytes = bt * C * tt * itemsize
    weight_bytes = (C * D + D * C + C + D) * 4
    vmem_limit = int(min(vmem_cap, 4 * block_bytes + 2 * weight_bytes + 8 * bt * C * 4 + (4 << 20)))
    vmem_limit = max(vmem_limit, 16 << 20)
    cparams = pltpu.CompilerParams(
        dimension_semantics=("parallel", "arbitrary"),
        vmem_limit_bytes=vmem_limit,
    )

    # Pass A: per-(batch, channel) sigmoid scale.
    s = pl.pallas_call(
        _make_scale_kernel(T, tt, needs_mask),
        out_shape=jax.ShapeDtypeStruct((B, C), jnp.float32),
        grid_spec=pltpu.PrefetchScalarGridSpec(
            num_scalar_prefetch=0,
            grid=(bg, tg),
            in_specs=[
                pl.BlockSpec((bt, C, tt), lambda b, t: (b, 0, t)),
                pl.BlockSpec((C, D), lambda b, t: (0, 0)),
                pl.BlockSpec((1, D), lambda b, t: (0, 0)),
                pl.BlockSpec((D, C), lambda b, t: (0, 0)),
                pl.BlockSpec((1, C), lambda b, t: (0, 0)),
            ],
            out_specs=pl.BlockSpec((bt, C), lambda b, t: (b, 0)),  # resident across t
            scratch_shapes=[pltpu.VMEM((bt, C), jnp.float32)],
        ),
        compiler_params=cparams,
    )(x, w1t, b1r, w2t, b2r)

    # Pass B: broadcast multiply over T tiles.
    out = pl.pallas_call(
        _se_apply_kernel,
        out_shape=jax.ShapeDtypeStruct((B, C, T), x.dtype),
        grid_spec=pltpu.PrefetchScalarGridSpec(
            num_scalar_prefetch=0,
            grid=(bg, tg),
            in_specs=[
                pl.BlockSpec((bt, C, tt), lambda b, t: (b, 0, t)),
                pl.BlockSpec((bt, C), lambda b, t: (b, 0)),
            ],
            out_specs=pl.BlockSpec((bt, C, tt), lambda b, t: (b, 0, t)),
        ),
        compiler_params=pltpu.CompilerParams(
            dimension_semantics=("parallel", "parallel"),
            vmem_limit_bytes=vmem_limit,
        ),
    )(x, s)
    return out


def se_connect(x, params, *, force_two_pass=False, t_block=None):
    """x: (B, C, T); params = prepare_se_params(w1, b1, w2, b2)."""
    w1t, b1r, w2t, b2r = params
    B, C, T = x.shape
    D = w1t.shape[1]
    itemsize = jnp.dtype(x.dtype).itemsize

    weight_bytes = (C * D + D * C + C + D) * 4
    vmem_cap = _vmem_budget()
    block_budget = max(vmem_cap - weight_bytes - (4 << 20), 8 << 20)

    bt = 0 if force_two_pass else _choose_block_batch(B, C, T, itemsize, block_budget)
    if bt > 0:
        return _se_fused(x, w1t, b1r, w2t, b2r, bt, vmem_cap)
    return _se_two_pass(x, w1t, b1r, w2t, b2r, block_budget, vmem_cap, t_block)


def se_connect_ref(x, w1, b1, w2, b2):
    m = x.mean(axis=2)
    h = jax.nn.relu(m @ w1.T + b1)
    s = jax.nn.sigmoid(h @ w2.T + b2)
    return x * s[:, :, None]


if __name__ == "__main__":
    # Small shapes consistent with SE_Connect(channels=64, se_bottleneck_dim=128);
    # T = 128 keeps output stores lane-dense.
    B, C, T, D = 16, 64, 128, 128

    key = jax.random.PRNGKey(0)
    kx, k1, k2, k3, k4, kx2 = jax.random.split(key, 6)

    x = jax.random.normal(kx, (B, C, T), dtype=jnp.float32)

    bound1 = 1.0 / (C ** 0.5)
    bound2 = 1.0 / (D ** 0.5)
    w1 = jax.random.uniform(k1, (D, C), minval=-bound1, maxval=bound1, dtype=jnp.float32)
    b1 = jax.random.uniform(k2, (D,), minval=-bound1, maxval=bound1, dtype=jnp.float32)
    w2 = jax.random.uniform(k3, (C, D), minval=-bound2, maxval=bound2, dtype=jnp.float32)
    b2 = jax.random.uniform(k4, (C,), minval=-bound2, maxval=bound2, dtype=jnp.float32)

    params = prepare_se_params(w1, b1, w2, b2)   # one-time prep, hoisted out of the call path

    # Main single-pass path (Bt=8, grid=2: one step per v7x TensorCore minimum, no padding).
    out = jax.block_until_ready(se_connect(x, params))
    ref = se_connect_ref(x, w1, b1, w2, b2)
    assert out.shape == (B, C, T)
    assert jnp.allclose(out, ref, atol=1e-5, rtol=1e-5), "fused path mismatch vs reference"

    # Exercise the T-tiled two-pass fallback (ragged last T block -> in-kernel mask,
    # B < 8 so the batch tile equals the full batch dim).
    B2, T2 = 6, 384
    x2 = jax.random.normal(kx2, (B2, C, T2), dtype=jnp.float32)
    out2 = jax.block_until_ready(se_connect(x2, params, force_two_pass=True, t_block=256))
    ref2 = se_connect_ref(x2, w1, b1, w2, b2)
    assert out2.shape == (B2, C, T2)
    assert jnp.allclose(out2, ref2, atol=1e-5, rtol=1e-5), "two-pass path mismatch vs reference"

    print("KERNEL_OK")
</pallas_src>

<mosaic_0001>
module attributes {stable_mosaic.version = 11 : i64} {
  func.func @_se_fused_kernel(%arg0: i32, %arg1: memref<8x64x128xf32, #tpu.memory_space<vmem>>, %arg2: memref<64x128xf32, #tpu.memory_space<vmem>>, %arg3: memref<1x128xf32, #tpu.memory_space<vmem>>, %arg4: memref<128x64xf32, #tpu.memory_space<vmem>>, %arg5: memref<1x64xf32, #tpu.memory_space<vmem>>, %arg6: memref<8x64x128xf32, #tpu.memory_space<vmem>>) attributes {dimension_semantics = [#tpu.dimension_semantics<parallel>], iteration_bounds = array<i64: 2>, scalar_prefetch = 0 : i64, scratch_operands = 0 : i64, tpu.core_type = #tpu.core_type<tc>, window_params = [{transform_indices = @transform_0, window_bounds = array<i64: 8, 64, 128>}, {pipeline_mode = #tpu.pipeline_mode<synchronous>, transform_indices = @transform_1, window_bounds = array<i64: 64, 128>}, {pipeline_mode = #tpu.pipeline_mode<synchronous>, transform_indices = @transform_2, window_bounds = array<i64: 1, 128>}, {pipeline_mode = #tpu.pipeline_mode<synchronous>, transform_indices = @transform_3, window_bounds = array<i64: 128, 64>}, {pipeline_mode = #tpu.pipeline_mode<synchronous>, transform_indices = @transform_4, window_bounds = array<i64: 1, 64>}, {transform_indices = @transform_5, window_bounds = array<i64: 8, 64, 128>}]} {
    %c0 = arith.constant 0 : index
    %c0_0 = arith.constant 0 : index
    %c0_1 = arith.constant 0 : index
    %0 = vector.load %arg1[%c0, %c0_0, %c0_1] : memref<8x64x128xf32, #tpu.memory_space<vmem>>, vector<8x64x128xf32>
    %cst = arith.constant dense<0.000000e+00> : vector<8x64xf32>
    %1 = vector.multi_reduction <add>, %0, %cst [2] : vector<8x64x128xf32> to vector<8x64xf32>
    %cst_2 = arith.constant 7.812500e-03 : f32
    %2 = vector.broadcast %cst_2 : f32 to vector<8x64xf32>
    %3 = arith.mulf %1, %2 : vector<8x64xf32>
    %c0_3 = arith.constant 0 : index
    %c0_4 = arith.constant 0 : index
    %4 = vector.load %arg2[%c0_3, %c0_4] : memref<64x128xf32, #tpu.memory_space<vmem>>, vector<64x128xf32>
    %cst_5 = arith.constant dense<0.000000e+00> : vector<8x128xf32>
    %5 = tpu.matmul %3, %4, %cst_5 {dimension_numbers = #tpu.dot_dimension_numbers<[1], [0], [0], [1], [0, 0, 1, 1], [], []>} : vector<8x64xf32>, vector<64x128xf32>, vector<8x128xf32> -> vector<8x128xf32>
    %c0_6 = arith.constant 0 : index
    %c0_7 = arith.constant 0 : index
    %6 = vector.load %arg3[%c0_6, %c0_7] : memref<1x128xf32, #tpu.memory_space<vmem>>, vector<1x128xf32>
    %7 = vector.broadcast %6 : vector<1x128xf32> to vector<8x128xf32>
    %8 = arith.addf %5, %7 : vector<8x128xf32>
    %cst_8 = arith.constant 0.000000e+00 : f32
    %9 = vector.broadcast %cst_8 : f32 to vector<8x128xf32>
    %10 = arith.maximumf %8, %9 : vector<8x128xf32>
    %c0_9 = arith.constant 0 : index
    %c0_10 = arith.constant 0 : index
    %11 = vector.load %arg4[%c0_9, %c0_10] : memref<128x64xf32, #tpu.memory_space<vmem>>, vector<128x64xf32>
    %cst_11 = arith.constant dense<0.000000e+00> : vector<8x64xf32>
    %12 = tpu.matmul %10, %11, %cst_11 {dimension_numbers = #tpu.dot_dimension_numbers<[1], [0], [0], [1], [0, 0, 1, 1], [], []>} : vector<8x128xf32>, vector<128x64xf32>, vector<8x64xf32> -> vector<8x64xf32>
    %c0_12 = arith.constant 0 : index
    %c0_13 = arith.constant 0 : index
    %13 = vector.load %arg5[%c0_12, %c0_13] : memref<1x64xf32, #tpu.memory_space<vmem>>, vector<1x64xf32>
    %14 = vector.broadcast %13 : vector<1x64xf32> to vector<8x64xf32>
    %15 = arith.addf %12, %14 : vector<8x64xf32>
    %16 = arith.negf %15 : vector<8x64xf32>
    %17 = math.exp %16 : vector<8x64xf32>
    %cst_14 = arith.constant 1.000000e+00 : f32
    %18 = vector.broadcast %cst_14 : f32 to vector<8x64xf32>
    %19 = arith.addf %18, %17 : vector<8x64xf32>
    %20 = arith.divf %18, %19 : vector<8x64xf32>
    %c0_15 = arith.constant 0 : index
    %c0_16 = arith.constant 0 : index
    %c0_17 = arith.constant 0 : index
    %21 = vector.load %arg1[%c0_15, %c0_16, %c0_17] : memref<8x64x128xf32, #tpu.memory_space<vmem>>, vector<8x64x128xf32>
    %22 = vector.shape_cast %20 : vector<8x64xf32> to vector<8x64x1xf32>
    %23 = vector.broadcast %22 : vector<8x64x1xf32> to vector<8x64x128xf32>
    %24 = arith.mulf %21, %23 : vector<8x64x128xf32>
    %c0_18 = arith.constant 0 : index
    %c0_19 = arith.constant 0 : index
    %c0_20 = arith.constant 0 : index
    %25 = vector.load %arg6[%c0_18, %c0_19, %c0_20] : memref<8x64x128xf32, #tpu.memory_space<vmem>>, vector<8x64x128xf32>
    tpu.vector_store %arg6[%c0_18, %c0_19, %c0_20], %24 {strides = array<i32>} : memref<8x64x128xf32, #tpu.memory_space<vmem>>, vector<8x64x128xf32>,
    return
  }
  func.func @transform_0(%arg0: i32) -> (i32, i32, i32) {
    %c0_i32 = arith.constant 0 : i32
    %c0_i32_0 = arith.constant 0 : i32
    %c0_i32_1 = arith.constant 0 : i32
    return %arg0, %c0_i32, %c0_i32_0 : i32, i32, i32
  }
  func.func @transform_1(%arg0: i32) -> (i32, i32) {
    %c0_i32 = arith.constant 0 : i32
    %c0_i32_0 = arith.constant 0 : i32
    %c0_i32_1 = arith.constant 0 : i32
    return %c0_i32, %c0_i32_0 : i32, i32
  }
  func.func @transform_2(%arg0: i32) -> (i32, i32) {
    %c0_i32 = arith.constant 0 : i32
    %c0_i32_0 = arith.constant 0 : i32
    %c0_i32_1 = arith.constant 0 : i32
    return %c0_i32, %c0_i32_0 : i32, i32
  }
  func.func @transform_3(%arg0: i32) -> (i32, i32) {
    %c0_i32 = arith.constant 0 : i32
    %c0_i32_0 = arith.constant 0 : i32
    %c0_i32_1 = arith.constant 0 : i32
    return %c0_i32, %c0_i32_0 : i32, i32
  }
  func.func @transform_4(%arg0: i32) -> (i32, i32) {
    %c0_i32 = arith.constant 0 : i32
    %c0_i32_0 = arith.constant 0 : i32
    %c0_i32_1 = arith.constant 0 : i32
    return %c0_i32, %c0_i32_0 : i32, i32
  }
  func.func @transform_5(%arg0: i32) -> (i32, i32, i32) {
    %c0_i32 = arith.constant 0 : i32
    %c0_i32_0 = arith.constant 0 : i32
    %c0_i32_1 = arith.constant 0 : i32
    return %arg0, %c0_i32, %c0_i32_0 : i32, i32, i32
  }
}

</mosaic_0001>

<llo_original>
// kernel: tpu_custom_call.1
$region0: #{tpu_custom_call.1}
  #allocation0 [shape = 'u32[]', space=smem, size = 0x4, offset = 0x4, fixed_abs, tag = 'smem constant byte address 0x4 - core index']
  #allocation1 [shape = 'u32[144,128]{1,0:T(1,128)}', space=vmem, size = 0x12000, scoped, tag = 'internal scratch']
  %s0 = inlined_call_operand.hbm [shape: f32[16,64,128], index: 0, kind: input, shape index: {}]
  %s1 = inlined_call_operand.vmem [shape: f32[64,128], index: 1, kind: input, shape index: {}]
  %s2 = inlined_call_operand.vmem [shape: f32[1,128], index: 2, kind: input, shape index: {}]
  %s3 = inlined_call_operand.vmem [shape: f32[128,64], index: 3, kind: input, shape index: {}]
  %s4 = inlined_call_operand.vmem [shape: f32[1,64], index: 4, kind: input, shape index: {}]
  %s5 = inlined_call_operand.hbm [shape: f32[16,64,128], index: 5, kind: output, shape index: {}]
  %s6 = sld [smem:[#allocation0]]
  $region57: #{tpu_custom_call.1} parent=0
    _
  %s8 = ssub.s32 1, %s6
  %s9 = scalar_select 0, %s8, %s6
  $region1: #{tpu_custom_call.1} parent=0
    #allocation2 [shape = 'u8[524288]{0}', space=vmem, size = 0x80000, scoped, tag = 'input window, operand 0']
    #allocation3 [shape = 's32[2]{0}', space=sflag, size = 0x8, scoped, tag = 'scoped memory for tpu_custom_call.1']
    #allocation4 [shape = 's32[2]{0}', space=sflag, size = 0x8, scoped, tag = 'scoped memory for tpu_custom_call.1']
    #allocation5 [shape = 'u8[524288]{0}', space=vmem, size = 0x80000, scoped, tag = 'output window, operand 0']
    %10 = vsyncpa [#allocation3], 0
    %s11 = scalar_lea.sflag [#allocation3], 1
    %12 = vsyncpa %s11, 0
    %13 = vsyncpa [#allocation4], 0
    %s14 = scalar_lea.sflag [#allocation4], 1
    %15 = vsyncpa %s14, 0
    loop: start=0, step=1, limit=4
    $region2: #{tpu_custom_call.1} parent=1 // loop_pre_header
      _
    $region3: #{tpu_custom_call.1} parent=1 // loop_header
      %s17 = sphi 0, %s21
      %p18 = scmp.ge.s32.totalorder %s17, 4
      %s27 = sphi 0, %s29
      %s30 = sphi 0, %s27
      %s31 = sphi 0, %s30
      %s47 = sphi 0, %s31
      %s51 = sphi 0, %s51
      %s53 = sphi 0, %s51
      %s54 = sphi 0, %s53
      %s68 = sphi 0, %s54
      %s72 = sphi 0, %s72
      %s74 = sphi 0, %s72
      %s75 = sphi 0, %s74
      %s89 = sphi 0, %s75
      %s93 = sphi 0, %s93
      %s95 = sphi 0, %s93
      %s96 = sphi 0, %s95
      %s110 = sphi 0, %s96
      %s114 = sphi 0, %s114
      %s116 = sphi 0, %s114
      %s117 = sphi 0, %s116
      %s131 = sphi 0, %s117
      %s137 = sphi 0, %s139
      %s140 = sphi 0, %s137
      %s141 = sphi 0, %s140
      %s157 = sphi 0, %s141
    $region4: #{tpu_custom_call.1} parent=1 // loop_header_branch
      %20 = sbr.rel (%p18) target = $region8
    $region5: #{tpu_custom_call.1} parent=1 // loop_body
      %s22 = ssub.s32 %s17, 1
      %s23 = ssub.s32 %s17, 2
      %s24 = sadd.s32 %s17, 1
      %s25 = ssub.s32 %s17, %s24
      %p26 = scmp.eq.s32.totalorder %s25, 0
      %s28 = sadd.s32 %s27, 1
      %s29 = scalar_select %p26, %s27, %s28
      %p32 = pneg %p26
      %p33 = scmp.eq.s32.totalorder %s17, 1
      %p34 = por %p32, %p33
      %p35 = scmp.ne.s32.totalorder %s27, %s30
      %p36 = scmp.eq.s32.totalorder %s17, 0
      %p37 = por %p35, %p36
      %p38 = scmp.ne.s32.totalorder %s27, %s30
      %p39 = scmp.eq.s32.totalorder %s22, 1
      %p40 = por %p38, %p39
      %p41 = scmp.ne.s32.totalorder %s30, %s31
      %p42 = scmp.eq.s32.totalorder %s22, 0
      %p43 = por %p41, %p42
      %p44 = scmp.ne.s32.totalorder %s30, %s31
      %p45 = scmp.eq.s32.totalorder %s23, 1
      %p46 = por %p44, %p45
      %p48 = scmp.ne.s32.totalorder %s31, %s47
      %p49 = scmp.eq.s32.totalorder %s23, 0
      %p50 = por %p48, %p49
      %s52 = sadd.s32 %s51, 1
      %p55 = scmp.eq.s32.totalorder %s17, 1
      %p56 = scmp.ne.s32.totalorder %s51, %s53
      %p57 = scmp.eq.s32.totalorder %s17, 0
      %p58 = por %p56, %p57
      %p59 = scmp.ne.s32.totalorder %s51, %s53
      %p60 = scmp.eq.s32.totalorder %s22, 1
      %p61 = por %p59, %p60
      %p62 = scmp.ne.s32.totalorder %s53, %s54
      %p63 = scmp.eq.s32.totalorder %s22, 0
      %p64 = por %p62, %p63
      %p65 = scmp.ne.s32.totalorder %s53, %s54
      %p66 = scmp.eq.s32.totalorder %s23, 1
      %p67 = por %p65, %p66
      %p69 = scmp.ne.s32.totalorder %s54, %s68
      %p70 = scmp.eq.s32.totalorder %s23, 0
      %p71 = por %p69, %p70
      %s73 = sadd.s32 %s72, 1
      %p76 = scmp.eq.s32.totalorder %s17, 1
      %p77 = scmp.ne.s32.totalorder %s72, %s74
      %p78 = scmp.eq.s32.totalorder %s17, 0
      %p79 = por %p77, %p78
      %p80 = scmp.ne.s32.totalorder %s72, %s74
      %p81 = scmp.eq.s32.totalorder %s22, 1
      %p82 = por %p80, %p81
      %p83 = scmp.ne.s32.totalorder %s74, %s75
      %p84 = scmp.eq.s32.totalorder %s22, 0
      %p85 = por %p83, %p84
      %p86 = scmp.ne.s32.totalorder %s74, %s75
      %p87 = scmp.eq.s32.totalorder %s23, 1
      %p88 = por %p86, %p87
      %p90 = scmp.ne.s32.totalorder %s75, %s89
      %p91 = scmp.eq.s32.totalorder %s23, 0
      %p92 = por %p90, %p91
      %s94 = sadd.s32 %s93, 1
      %p97 = scmp.eq.s32.totalorder %s17, 1
      %p98 = scmp.ne.s32.totalorder %s93, %s95
      %p99 = scmp.eq.s32.totalorder %s17, 0
      %p100 = por %p98, %p99
      %p101 = scmp.ne.s32.totalorder %s93, %s95
      %p102 = scmp.eq.s32.totalorder %s22, 1
      %p103 = por %p101, %p102
      %p104 = scmp.ne.s32.totalorder %s95, %s96
      %p105 = scmp.eq.s32.totalorder %s22, 0
      %p106 = por %p104, %p105
      %p107 = scmp.ne.s32.totalorder %s95, %s96
      %p108 = scmp.eq.s32.totalorder %s23, 1
      %p109 = por %p107, %p108
      %p111 = scmp.ne.s32.totalorder %s96, %s110
      %p112 = scmp.eq.s32.totalorder %s23, 0
      %p113 = por %p111, %p112
      %s115 = sadd.s32 %s114, 1
      %p118 = scmp.eq.s32.totalorder %s17, 1
      %p119 = scmp.ne.s32.totalorder %s114, %s116
      %p120 = scmp.eq.s32.totalorder %s17, 0
      %p121 = por %p119, %p120
      %p122 = scmp.ne.s32.totalorder %s114, %s116
      %p123 = scmp.eq.s32.totalorder %s22, 1
      %p124 = por %p122, %p123
      %p125 = scmp.ne.s32.totalorder %s116, %s117
      %p126 = scmp.eq.s32.totalorder %s22, 0
      %p127 = por %p125, %p126
      %p128 = scmp.ne.s32.totalorder %s116, %s117
      %p129 = scmp.eq.s32.totalorder %s23, 1
      %p130 = por %p128, %p129
      %p132 = scmp.ne.s32.totalorder %s117, %s131
      %p133 = scmp.eq.s32.totalorder %s23, 0
      %p134 = por %p132, %p133
      %s135 = ssub.s32 %s17, %s24
      %p136 = scmp.eq.s32.totalorder %s135, 0
      %s138 = sadd.s32 %s137, 1
      %s139 = scalar_select %p136, %s137, %s138
      %p142 = pneg %p136
      %p143 = scmp.eq.s32.totalorder %s17, 1
      %p144 = por %p142, %p143
      %p145 = scmp.ne.s32.totalorder %s137, %s140
      %p146 = scmp.eq.s32.totalorder %s17, 0
      %p147 = por %p145, %p146
      %p148 = scmp.ne.s32.totalorder %s137, %s140
      %p149 = scmp.eq.s32.totalorder %s22, 1
      %p150 = por %p148, %p149
      %p151 = scmp.ne.s32.totalorder %s140, %s141
      %p152 = scmp.eq.s32.totalorder %s22, 0
      %p153 = por %p151, %p152
      %p154 = scmp.ne.s32.totalorder %s140, %s141
      %p155 = scmp.eq.s32.totalorder %s23, 1
      %p156 = por %p154, %p155
      %p158 = scmp.ne.s32.totalorder %s141, %s157
      %p159 = scmp.eq.s32.totalorder %s23, 0
      %p160 = por %p158, %p159
      %p161 = scmp.le.s32.totalorder 1, %s17
      %p162 = scmp.lt.s32.totalorder %s17, 3
      %p163 = pnand %p161, %p162
      %p164 = pneg %p163
      // Predicated region
      $region9: #{tpu_custom_call.1} parent=5 // pred_check
        _
      $region10: #{tpu_custom_call.1} parent=5 // pred_check_branch
        %166 = sbr.rel (%p163) target = $region12
      $region11: #{tpu_custom_call.1} parent=5 // pred_region
        %s167 = ssub.s32 %s17, 1
        // Predicated region
        $region13: #{tpu_custom_call.1} parent=11 // pred_check
          %p168 = pneg %p64
        $region14: #{tpu_custom_call.1} parent=11 // pred_check_branch
          %170 = sbr.rel (%p168) target = $region16
        $region15: #{tpu_custom_call.1} parent=11 // pred_region
          _
        $region16: #{tpu_custom_call.1} parent=11 // pred_fallthru
          _
        // Predicated region
        $region17: #{tpu_custom_call.1} parent=11 // pred_check
          %p171 = pneg %p85
        $region18: #{tpu_custom_call.1} parent=11 // pred_check_branch
          %173 = sbr.rel (%p171) target = $region20
        $region19: #{tpu_custom_call.1} parent=11 // pred_region
          _
        $region20: #{tpu_custom_call.1} parent=11 // pred_fallthru
          _
        // Predicated region
        $region21: #{tpu_custom_call.1} parent=11 // pred_check
          %p174 = pneg %p106
        $region22: #{tpu_custom_call.1} parent=11 // pred_check_branch
          %176 = sbr.rel (%p174) target = $region24
        $region23: #{tpu_custom_call.1} parent=11 // pred_region
          _
        $region24: #{tpu_custom_call.1} parent=11 // pred_fallthru
          _
        // Predicated region
        $region25: #{tpu_custom_call.1} parent=11 // pred_check
          %p177 = pneg %p127
        $region26: #{tpu_custom_call.1} parent=11 // pred_check_branch
          %179 = sbr.rel (%p177) target = $region28
        $region27: #{tpu_custom_call.1} parent=11 // pred_region
          _
        $region28: #{tpu_custom_call.1} parent=11 // pred_fallthru
          _
      $region12: #{tpu_custom_call.1} parent=5 // pred_fallthru
        _
      %p180 = scmp.lt.s32.totalorder %s17, 2
      // Predicated region
      $region29: #{tpu_custom_call.1} parent=5 // pred_check
        %p181 = pneg %p180
      $region30: #{tpu_custom_call.1} parent=5 // pred_check_branch
        %183 = sbr.rel (%p181) target = $region32
      $region31: #{tpu_custom_call.1} parent=5 // pred_region
        // Predicated region
        $region33: #{tpu_custom_call.1} parent=31 // pred_check
          %p184 = pneg %p37
        $region34: #{tpu_custom_call.1} parent=31 // pred_check_branch
          %186 = sbr.rel (%p184) target = $region36
        $region35: #{tpu_custom_call.1} parent=31 // pred_region
          %s187 = sand.u32 %s27, 1
          %s188 = scalar_lea.sflag [#allocation3], %s187
          %s189 = sand.u32 %s27, 1
          %s190 = smul.addr %s189, 512
          %s191 = scalar_lea.vmem [#allocation2], %s190
          %s192 = smul.u32 8, %s17
          %s194 = ssub.s32 8192, 8192
          %195 = vsyncadd %s188, %s194
          %s196 = smul.addr %s192, 8
          %s197 = smul.addr %s196, 128
          %s198 = scalar_lea.hbm %s0, %s197
          %s199 = sshll.u32 %s191, 4
          %s200 = int_to_ptr.vmem [resolvable:$true] %s199
          %205 = dma.hbm_to_vmem [thread:$0]  %s198, 8192, %s200, %s188, 128, 128, 8
        $region36: #{tpu_custom_call.1} parent=31 // pred_fallthru
          _
      $region32: #{tpu_custom_call.1} parent=5 // pred_fallthru
        _
      %p206 = scmp.le.s32.totalorder 1, %s17
      %p207 = scmp.lt.s32.totalorder %s17, 3
      %p208 = pnand %p206, %p207
      %p209 = pneg %p208
      // Predicated region
      $region37: #{tpu_custom_call.1} parent=5 // pred_check
        _
      $region38: #{tpu_custom_call.1} parent=5 // pred_check_branch
        %211 = sbr.rel (%p208) target = $region40
      $region39: #{tpu_custom_call.1} parent=5 // pred_region
        %s212 = ssub.s32 %s17, 1
        %s213 = sand.u32 %s30, 1
        %s214 = scalar_lea.sflag [#allocation3], %s213
        %s215 = sand.u32 %s30, 1
        %s216 = smul.addr %s215, 512
        %s217 = scalar_lea.vmem [#allocation2], %s216
        // Predicated region
        $region41: #{tpu_custom_call.1} parent=39 // pred_check
          %p218 = pneg %p43
        $region42: #{tpu_custom_call.1} parent=39 // pred_check_branch
          %220 = sbr.rel (%p218) target = $region44
        $region43: #{tpu_custom_call.1} parent=39 // pred_region
          %221 = dma.done %s214, 8192
        $region44: #{tpu_custom_call.1} parent=39 // pred_fallthru
          _
        %s222 = sand.u32 %s30, 1
        %s223 = scalar_lea.sflag [#allocation3], %s222
        %s224 = sand.u32 %s30, 1
        %s225 = smul.addr %s224, 512
        %s226 = scalar_lea.vmem [#allocation2], %s225
        %p227 = pneg %p43
        %p228 = pneg %p40
        %p229 = pneg %p64
        %p230 = pneg %p61
        %p231 = pneg %p85
        %p232 = pneg %p82
        %p233 = pneg %p106
        %p234 = pneg %p103
        %p235 = pneg %p127
        %p236 = pneg %p124
        %p237 = pneg %p153
        %p238 = pneg %p150
        %s239 = sand.u32 %s140, 1
        %s240 = scalar_lea.sflag [#allocation4], %s239
        %s241 = sand.u32 %s140, 1
        %s242 = smul.addr %s241, 512
        %s243 = scalar_lea.vmem [#allocation5], %s242
        %s244 = smul.u32 8, %s22
        %s245 = smul.u32 8, %s22
        %v246 = vld [vmem:[%s217] sm:$0xff]
        %v247 = vld [vmem:[%s217 + $0x8] sm:$0xff]
        %v248 = vld [vmem:[%s217 + $0x10] sm:$0xff]
        %v249 = vld [vmem:[%s217 + $0x18] sm:$0xff]
        %v250 = vld [vmem:[%s217 + $0x20] sm:$0xff]
        %v251 = vld [vmem:[%s217 + $0x28] sm:$0xff]
        %v252 = vld [vmem:[%s217 + $0x30] sm:$0xff]
        %v253 = vld [vmem:[%s217 + $0x38] sm:$0xff]
        %v254 = vld [vmem:[%s217 + $0x40] sm:$0xff]
        %v255 = vld [vmem:[%s217 + $0x48] sm:$0xff]
        %v256 = vld [vmem:[%s217 + $0x50] sm:$0xff]
        %v257 = vld [vmem:[%s217 + $0x58] sm:$0xff]
        %v258 = vld [vmem:[%s217 + $0x60] sm:$0xff]
        %v259 = vld [vmem:[%s217 + $0x68] sm:$0xff]
        %v260 = vld [vmem:[%s217 + $0x70] sm:$0xff]
        %v261 = vld [vmem:[%s217 + $0x78] sm:$0xff]
        %v262 = vld [vmem:[%s217 + $0x80] sm:$0xff]
        %v263 = vld [vmem:[%s217 + $0x88] sm:$0xff]
        %v264 = vld [vmem:[%s217 + $0x90] sm:$0xff]
        %v265 = vld [vmem:[%s217 + $0x98] sm:$0xff]
        %v266 = vld [vmem:[%s217 + $0xa0] sm:$0xff]
        %v267 = vld [vmem:[%s217 + $0xa8] sm:$0xff]
        %v268 = vld [vmem:[%s217 + $0xb0] sm:$0xff]
        %v269 = vld [vmem:[%s217 + $0xb8] sm:$0xff]
        %v270 = vld [vmem:[%s217 + $0xc0] sm:$0xff]
        %v271 = vld [vmem:[%s217 + $0xc8] sm:$0xff]
        %v272 = vld [vmem:[%s217 + $0xd0] sm:$0xff]
        %v273 = vld [vmem:[%s217 + $0xd8] sm:$0xff]
        %v274 = vld [vmem:[%s217 + $0xe0] sm:$0xff]
        %v275 = vld [vmem:[%s217 + $0xe8] sm:$0xff]
        %v276 = vld [vmem:[%s217 + $0xf0] sm:$0xff]
        %v277 = vld [vmem:[%s217 + $0xf8] sm:$0xff]
        %v278 = vld [vmem:[%s217 + $0x100] sm:$0xff]
        %v279 = vld [vmem:[%s217 + $0x108] sm:$0xff]
        %v280 = vld [vmem:[%s217 + $0x110] sm:$0xff]
        %v281 = vld [vmem:[%s217 + $0x118] sm:$0xff]
        %v282 = vld [vmem:[%s217 + $0x120] sm:$0xff]
        %v283 = vld [vmem:[%s217 + $0x128] sm:$0xff]
        %v284 = vld [vmem:[%s217 + $0x130] sm:$0xff]
        %v285 = vld [vmem:[%s217 + $0x138] sm:$0xff]
        %v286 = vld [vmem:[%s217 + $0x140] sm:$0xff]
        %v287 = vld [vmem:[%s217 + $0x148] sm:$0xff]
        %v288 = vld [vmem:[%s217 + $0x150] sm:$0xff]
        %v289 = vld [vmem:[%s217 + $0x158] sm:$0xff]
        %v290 = vld [vmem:[%s217 + $0x160] sm:$0xff]
        %v291 = vld [vmem:[%s217 + $0x168] sm:$0xff]
        %v292 = vld [vmem:[%s217 + $0x170] sm:$0xff]
        %v293 = vld [vmem:[%s217 + $0x178] sm:$0xff]
        %v294 = vld [vmem:[%s217 + $0x180] sm:$0xff]
        %v295 = vld [vmem:[%s217 + $0x188] sm:$0xff]
        %v296 = vld [vmem:[%s217 + $0x190] sm:$0xff]
        %v297 = vld [vmem:[%s217 + $0x198] sm:$0xff]
        %v298 = vld [vmem:[%s217 + $0x1a0] sm:$0xff]
        %v299 = vld [vmem:[%s217 + $0x1a8] sm:$0xff]
        %v300 = vld [vmem:[%s217 + $0x1b0] sm:$0xff]
        %v301 = vld [vmem:[%s217 + $0x1b8] sm:$0xff]
        %v302 = vld [vmem:[%s217 + $0x1c0] sm:$0xff]
        %v303 = vld [vmem:[%s217 + $0x1c8] sm:$0xff]
        %v304 = vld [vmem:[%s217 + $0x1d0] sm:$0xff]
        %v305 = vld [vmem:[%s217 + $0x1d8] sm:$0xff]
        %v306 = vld [vmem:[%s217 + $0x1e0] sm:$0xff]
        %v307 = vld [vmem:[%s217 + $0x1e8] sm:$0xff]
        %v308 = vld [vmem:[%s217 + $0x1f0] sm:$0xff]
        %v309 = vld [vmem:[%s217 + $0x1f8] sm:$0xff]
        %310 = vadd.xlane.f32.xlu0 %v246
        %v311 = vpop.xlane.xlu0 %310
        %312 = vadd.xlane.f32.xlu0 %v247
        %v313 = vpop.xlane.xlu0 %312
        %314 = vadd.xlane.f32.xlu0 %v248
        %v315 = vpop.xlane.xlu0 %314
        %316 = vadd.xlane.f32.xlu0 %v249
        %v317 = vpop.xlane.xlu0 %316
        %318 = vadd.xlane.f32.xlu0 %v250
        %v319 = vpop.xlane.xlu0 %318
        %320 = vadd.xlane.f32.xlu0 %v251
        %v321 = vpop.xlane.xlu0 %320
        %322 = vadd.xlane.f32.xlu0 %v252
        %v323 = vpop.xlane.xlu0 %322
        %324 = vadd.xlane.f32.xlu0 %v253
        %v325 = vpop.xlane.xlu0 %324
        %326 = vadd.xlane.f32.xlu0 %v254
        %v327 = vpop.xlane.xlu0 %326
        %328 = vadd.xlane.f32.xlu0 %v255
        %v329 = vpop.xlane.xlu0 %328
        %330 = vadd.xlane.f32.xlu0 %v256
        %v331 = vpop.xlane.xlu0 %330
        %332 = vadd.xlane.f32.xlu0 %v257
        %v333 = vpop.xlane.xlu0 %332
        %334 = vadd.xlane.f32.xlu0 %v258
        %v335 = vpop.xlane.xlu0 %334
        %336 = vadd.xlane.f32.xlu0 %v259
        %v337 = vpop.xlane.xlu0 %336
        %338 = vadd.xlane.f32.xlu0 %v260
        %v339 = vpop.xlane.xlu0 %338
        %340 = vadd.xlane.f32.xlu0 %v261
        %v341 = vpop.xlane.xlu0 %340
        %342 = vadd.xlane.f32.xlu0 %v262
        %v343 = vpop.xlane.xlu0 %342
        %344 = vadd.xlane.f32.xlu0 %v263
        %v345 = vpop.xlane.xlu0 %344
        %346 = vadd.xlane.f32.xlu0 %v264
        %v347 = vpop.xlane.xlu0 %346
        %348 = vadd.xlane.f32.xlu0 %v265
        %v349 = vpop.xlane.xlu0 %348
        %350 = vadd.xlane.f32.xlu0 %v266
        %v351 = vpop.xlane.xlu0 %350
        %352 = vadd.xlane.f32.xlu0 %v267
        %v353 = vpop.xlane.xlu0 %352
        %354 = vadd.xlane.f32.xlu0 %v268
        %v355 = vpop.xlane.xlu0 %354
        %356 = vadd.xlane.f32.xlu0 %v269
        %v357 = vpop.xlane.xlu0 %356
        %358 = vadd.xlane.f32.xlu0 %v270
        %v359 = vpop.xlane.xlu0 %358
        %360 = vadd.xlane.f32.xlu0 %v271
        %v361 = vpop.xlane.xlu0 %360
        %362 = vadd.xlane.f32.xlu0 %v272
        %v363 = vpop.xlane.xlu0 %362
        %364 = vadd.xlane.f32.xlu0 %v273
        %v365 = vpop.xlane.xlu0 %364
        %366 = vadd.xlane.f32.xlu0 %v274
        %v367 = vpop.xlane.xlu0 %366
        %368 = vadd.xlane.f32.xlu0 %v275
        %v369 = vpop.xlane.xlu0 %368
        %370 = vadd.xlane.f32.xlu0 %v276
        %v371 = vpop.xlane.xlu0 %370
        %372 = vadd.xlane.f32.xlu0 %v277
        %v373 = vpop.xlane.xlu0 %372
        %374 = vadd.xlane.f32.xlu0 %v278
        %v375 = vpop.xlane.xlu0 %374
        %376 = vadd.xlane.f32.xlu0 %v279
        %v377 = vpop.xlane.xlu0 %376
        %378 = vadd.xlane.f32.xlu0 %v280
        %v379 = vpop.xlane.xlu0 %378
        %380 = vadd.xlane.f32.xlu0 %v281
        %v381 = vpop.xlane.xlu0 %380
        %382 = vadd.xlane.f32.xlu0 %v282
        %v383 = vpop.xlane.xlu0 %382
        %384 = vadd.xlane.f32.xlu0 %v283
        %v385 = vpop.xlane.xlu0 %384
        %386 = vadd.xlane.f32.xlu0 %v284
        %v387 = vpop.xlane.xlu0 %386
        %388 = vadd.xlane.f32.xlu0 %v285
        %v389 = vpop.xlane.xlu0 %388
        %390 = vadd.xlane.f32.xlu0 %v286
        %v391 = vpop.xlane.xlu0 %390
        %392 = vadd.xlane.f32.xlu0 %v287
        %v393 = vpop.xlane.xlu0 %392
        %394 = vadd.xlane.f32.xlu0 %v288
        %v395 = vpop.xlane.xlu0 %394
        %396 = vadd.xlane.f32.xlu0 %v289
        %v397 = vpop.xlane.xlu0 %396
        %398 = vadd.xlane.f32.xlu0 %v290
        %v399 = vpop.xlane.xlu0 %398
        %400 = vadd.xlane.f32.xlu0 %v291
        %v401 = vpop.xlane.xlu0 %400
        %402 = vadd.xlane.f32.xlu0 %v292
        %v403 = vpop.xlane.xlu0 %402
        %404 = vadd.xlane.f32.xlu0 %v293
        %v405 = vpop.xlane.xlu0 %404
        %406 = vadd.xlane.f32.xlu0 %v294
        %v407 = vpop.xlane.xlu0 %406
        %408 = vadd.xlane.f32.xlu0 %v295
        %v409 = vpop.xlane.xlu0 %408
        %410 = vadd.xlane.f32.xlu0 %v296
        %v411 = vpop.xlane.xlu0 %410
        %412 = vadd.xlane.f32.xlu0 %v297
        %v413 = vpop.xlane.xlu0 %412
        %414 = vadd.xlane.f32.xlu0 %v298
        %v415 = vpop.xlane.xlu0 %414
        %416 = vadd.xlane.f32.xlu0 %v299
        %v417 = vpop.xlane.xlu0 %416
        %418 = vadd.xlane.f32.xlu0 %v300
        %v419 = vpop.xlane.xlu0 %418
        %420 = vadd.xlane.f32.xlu0 %v301
        %v421 = vpop.xlane.xlu0 %420
        %422 = vadd.xlane.f32.xlu0 %v302
        %v423 = vpop.xlane.xlu0 %422
        %424 = vadd.xlane.f32.xlu0 %v303
        %v425 = vpop.xlane.xlu0 %424
        %426 = vadd.xlane.f32.xlu0 %v304
        %v427 = vpop.xlane.xlu0 %426
        %428 = vadd.xlane.f32.xlu0 %v305
        %v429 = vpop.xlane.xlu0 %428
        %430 = vadd.xlane.f32.xlu0 %v306
        %v431 = vpop.xlane.xlu0 %430
        %432 = vadd.xlane.f32.xlu0 %v307
        %v433 = vpop.xlane.xlu0 %432
        %434 = vadd.xlane.f32.xlu0 %v308
        %v435 = vpop.xlane.xlu0 %434
        %436 = vadd.xlane.f32.xlu0 %v309
        %v437 = vpop.xlane.xlu0 %436
        %v438 = vmul.f32 %v311, 0.0078125
        %v439 = vmul.f32 %v313, 0.0078125
        %v440 = vmul.f32 %v315, 0.0078125
        %v441 = vmul.f32 %v317, 0.0078125
        %v442 = vmul.f32 %v319, 0.0078125
        %v443 = vmul.f32 %v321, 0.0078125
        %v444 = vmul.f32 %v323, 0.0078125
        %v445 = vmul.f32 %v325, 0.0078125
        %v446 = vmul.f32 %v327, 0.0078125
        %v447 = vmul.f32 %v329, 0.0078125
        %v448 = vmul.f32 %v331, 0.0078125
        %v449 = vmul.f32 %v333, 0.0078125
        %v450 = vmul.f32 %v335, 0.0078125
        %v451 = vmul.f32 %v337, 0.0078125
        %v452 = vmul.f32 %v339, 0.0078125
        %v453 = vmul.f32 %v341, 0.0078125
        %v454 = vmul.f32 %v343, 0.0078125
        %v455 = vmul.f32 %v345, 0.0078125
        %v456 = vmul.f32 %v347, 0.0078125
        %v457 = vmul.f32 %v349, 0.0078125
        %v458 = vmul.f32 %v351, 0.0078125
        %v459 = vmul.f32 %v353, 0.0078125
        %v460 = vmul.f32 %v355, 0.0078125
        %v461 = vmul.f32 %v357, 0.0078125
        %v462 = vmul.f32 %v359, 0.0078125
        %v463 = vmul.f32 %v361, 0.0078125
        %v464 = vmul.f32 %v363, 0.0078125
        %v465 = vmul.f32 %v365, 0.0078125
        %v466 = vmul.f32 %v367, 0.0078125
        %v467 = vmul.f32 %v369, 0.0078125
        %v468 = vmul.f32 %v371, 0.0078125
        %v469 = vmul.f32 %v373, 0.0078125
        %v470 = vmul.f32 %v375, 0.0078125
        %v471 = vmul.f32 %v377, 0.0078125
        %v472 = vmul.f32 %v379, 0.0078125
        %v473 = vmul.f32 %v381, 0.0078125
        %v474 = vmul.f32 %v383, 0.0078125
        %v475 = vmul.f32 %v385, 0.0078125
        %v476 = vmul.f32 %v387, 0.0078125
        %v477 = vmul.f32 %v389, 0.0078125
        %v478 = vmul.f32 %v391, 0.0078125
        %v479 = vmul.f32 %v393, 0.0078125
        %v480 = vmul.f32 %v395, 0.0078125
        %v481 = vmul.f32 %v397, 0.0078125
        %v482 = vmul.f32 %v399, 0.0078125
        %v483 = vmul.f32 %v401, 0.0078125
        %v484 = vmul.f32 %v403, 0.0078125
        %v485 = vmul.f32 %v405, 0.0078125
        %v486 = vmul.f32 %v407, 0.0078125
        %v487 = vmul.f32 %v409, 0.0078125
        %v488 = vmul.f32 %v411, 0.0078125
        %v489 = vmul.f32 %v413, 0.0078125
        %v490 = vmul.f32 %v415, 0.0078125
        %v491 = vmul.f32 %v417, 0.0078125
        %v492 = vmul.f32 %v419, 0.0078125
        %v493 = vmul.f32 %v421, 0.0078125
        %v494 = vmul.f32 %v423, 0.0078125
        %v495 = vmul.f32 %v425, 0.0078125
        %v496 = vmul.f32 %v427, 0.0078125
        %v497 = vmul.f32 %v429, 0.0078125
        %v498 = vmul.f32 %v431, 0.0078125
        %v499 = vmul.f32 %v433, 0.0078125
        %v500 = vmul.f32 %v435, 0.0078125
        %v501 = vmul.f32 %v437, 0.0078125
        %v502 = vld [vmem:[%s1] sm:$0xff]
        %v503 = vld [vmem:[%s1 + $0x8] sm:$0xff]
        %v504 = vld [vmem:[%s1 + $0x10] sm:$0xff]
        %v505 = vld [vmem:[%s1 + $0x18] sm:$0xff]
        %v506 = vld [vmem:[%s1 + $0x20] sm:$0xff]
        %v507 = vld [vmem:[%s1 + $0x28] sm:$0xff]
        %v508 = vld [vmem:[%s1 + $0x30] sm:$0xff]
        %v509 = vld [vmem:[%s1 + $0x38] sm:$0xff]
        %v510 = vld [vmem:[%s2] sm:$0x1]
        %v512 = vlaneseq
        %v513 = vshrl.u32 %v512, 7
        %v514 = vsub.s32 0, %v513
        %v515 = vrot.slane %v510, %v514
        %v581 = vlaneseq
        %v582 = vand.u32 %v581, 127
        %v583 = vlaneseq
        %v584 = vshrl.u32 %v583, 7
        %v585 = vsub.s32 %v582, %v584
        %v586 = vrot.slane %v438, %v585
        %v587 = vadd.s32 %v582, 4294967288
        %v588 = vlaneseq
        %v589 = vshrl.u32 %v588, 7
        %v590 = vsub.s32 %v587, %v589
        %v591 = vrot.slane %v439, %v590
        %vm592 = vcmask 130112
        %v593 = vsel %vm592, %v591, %v586
        %v594 = vadd.s32 %v582, 4294967280
        %v595 = vlaneseq
        %v596 = vshrl.u32 %v595, 7
        %v597 = vsub.s32 %v594, %v596
        %v598 = vrot.slane %v440, %v597
        %vm599 = vcmask 195712
        %v600 = vsel %vm599, %v598, %v593
        %v601 = vadd.s32 %v582, 4294967272
        %v602 = vlaneseq
        %v603 = vshrl.u32 %v602, 7
        %v604 = vsub.s32 %v601, %v603
        %v605 = vrot.slane %v441, %v604
        %vm606 = vcmask 261312
        %v607 = vsel %vm606, %v605, %v600
        %v608 = vadd.s32 %v582, 4294967264
        %v609 = vlaneseq
        %v610 = vshrl.u32 %v609, 7
        %v611 = vsub.s32 %v608, %v610
        %v612 = vrot.slane %v442, %v611
        %vm613 = vcmask 326912
        %v614 = vsel %vm613, %v612, %v607
        %v615 = vadd.s32 %v582, 4294967256
        %v616 = vlaneseq
        %v617 = vshrl.u32 %v616, 7
        %v618 = vsub.s32 %v615, %v617
        %v619 = vrot.slane %v443, %v618
        %vm620 = vcmask 392512
        %v621 = vsel %vm620, %v619, %v614
        %v622 = vadd.s32 %v582, 4294967248
        %v623 = vlaneseq
        %v624 = vshrl.u32 %v623, 7
        %v625 = vsub.s32 %v622, %v624
        %v626 = vrot.slane %v444, %v625
        %vm627 = vcmask 458112
        %v628 = vsel %vm627, %v626, %v621
        %v629 = vadd.s32 %v582, 4294967240
        %v630 = vlaneseq
        %v631 = vshrl.u32 %v630, 7
        %v632 = vsub.s32 %v629, %v631
        %v633 = vrot.slane %v445, %v632
        %vm634 = vcmask 523712
        %v635 = vsel %vm634, %v633, %v628
        %v636 = vlaneseq
        %v637 = vshrl.u32 %v636, 7
        %v638 = vsub.s32 %v582, %v637
        %v639 = vrot.slane %v446, %v638
        %v640 = vlaneseq
        %v641 = vshrl.u32 %v640, 7
        %v642 = vsub.s32 %v587, %v641
        %v643 = vrot.slane %v447, %v642
        %v644 = vsel %vm592, %v643, %v639
        %v645 = vlaneseq
        %v646 = vshrl.u32 %v645, 7
        %v647 = vsub.s32 %v594, %v646
        %v648 = vrot.slane %v448, %v647
        %v649 = vsel %vm599, %v648, %v644
        %v650 = vlaneseq
        %v651 = vshrl.u32 %v650, 7
        %v652 = vsub.s32 %v601, %v651
        %v653 = vrot.slane %v449, %v652
        %v654 = vsel %vm606, %v653, %v649
        %v655 = vlaneseq
        %v656 = vshrl.u32 %v655, 7
        %v657 = vsub.s32 %v608, %v656
        %v658 = vrot.slane %v450, %v657
        %v659 = vsel %vm613, %v658, %v654
        %v660 = vlaneseq
        %v661 = vshrl.u32 %v660, 7
        %v662 = vsub.s32 %v615, %v661
        %v663 = vrot.slane %v451, %v662
        %v664 = vsel %vm620, %v663, %v659
        %v665 = vlaneseq
        %v666 = vshrl.u32 %v665, 7
        %v667 = vsub.s32 %v622, %v666
        %v668 = vrot.slane %v452, %v667
        %v669 = vsel %vm627, %v668, %v664
        %v670 = vlaneseq
        %v671 = vshrl.u32 %v670, 7
        %v672 = vsub.s32 %v629, %v671
        %v673 = vrot.slane %v453, %v672
        %v674 = vsel %vm634, %v673, %v669
        %v675 = vlaneseq
        %v676 = vshrl.u32 %v675, 7
        %v677 = vsub.s32 %v582, %v676
        %v678 = vrot.slane %v454, %v677
        %v679 = vlaneseq
        %v680 = vshrl.u32 %v679, 7
        %v681 = vsub.s32 %v587, %v680
        %v682 = vrot.slane %v455, %v681
        %v683 = vsel %vm592, %v682, %v678
        %v684 = vlaneseq
        %v685 = vshrl.u32 %v684, 7
        %v686 = vsub.s32 %v594, %v685
        %v687 = vrot.slane %v456, %v686
        %v688 = vsel %vm599, %v687, %v683
        %v689 = vlaneseq
        %v690 = vshrl.u32 %v689, 7
        %v691 = vsub.s32 %v601, %v690
        %v692 = vrot.slane %v457, %v691
        %v693 = vsel %vm606, %v692, %v688
        %v694 = vlaneseq
        %v695 = vshrl.u32 %v694, 7
        %v696 = vsub.s32 %v608, %v695
        %v697 = vrot.slane %v458, %v696
        %v698 = vsel %vm613, %v697, %v693
        %v699 = vlaneseq
        %v700 = vshrl.u32 %v699, 7
        %v701 = vsub.s32 %v615, %v700
        %v702 = vrot.slane %v459, %v701
        %v703 = vsel %vm620, %v702, %v698
        %v704 = vlaneseq
        %v705 = vshrl.u32 %v704, 7
        %v706 = vsub.s32 %v622, %v705
        %v707 = vrot.slane %v460, %v706
        %v708 = vsel %vm627, %v707, %v703
        %v709 = vlaneseq
        %v710 = vshrl.u32 %v709, 7
        %v711 = vsub.s32 %v629, %v710
        %v712 = vrot.slane %v461, %v711
        %v713 = vsel %vm634, %v712, %v708
        %v714 = vlaneseq
        %v715 = vshrl.u32 %v714, 7
        %v716 = vsub.s32 %v582, %v715
        %v717 = vrot.slane %v462, %v716
        %v718 = vlaneseq
        %v719 = vshrl.u32 %v718, 7
        %v720 = vsub.s32 %v587, %v719
        %v721 = vrot.slane %v463, %v720
        %v722 = vsel %vm592, %v721, %v717
        %v723 = vlaneseq
        %v724 = vshrl.u32 %v723, 7
        %v725 = vsub.s32 %v594, %v724
        %v726 = vrot.slane %v464, %v725
        %v727 = vsel %vm599, %v726, %v722
        %v728 = vlaneseq
        %v729 = vshrl.u32 %v728, 7
        %v730 = vsub.s32 %v601, %v729
        %v731 = vrot.slane %v465, %v730
        %v732 = vsel %vm606, %v731, %v727
        %v733 = vlaneseq
        %v734 = vshrl.u32 %v733, 7
        %v735 = vsub.s32 %v608, %v734
        %v736 = vrot.slane %v466, %v735
        %v737 = vsel %vm613, %v736, %v732
        %v738 = vlaneseq
        %v739 = vshrl.u32 %v738, 7
        %v740 = vsub.s32 %v615, %v739
        %v741 = vrot.slane %v467, %v740
        %v742 = vsel %vm620, %v741, %v737
        %v743 = vlaneseq
        %v744 = vshrl.u32 %v743, 7
        %v745 = vsub.s32 %v622, %v744
        %v746 = vrot.slane %v468, %v745
        %v747 = vsel %vm627, %v746, %v742
        %v748 = vlaneseq
        %v749 = vshrl.u32 %v748, 7
        %v750 = vsub.s32 %v629, %v749
        %v751 = vrot.slane %v469, %v750
        %v752 = vsel %vm634, %v751, %v747
        %v753 = vlaneseq
        %v754 = vshrl.u32 %v753, 7
        %v755 = vsub.s32 %v582, %v754
        %v756 = vrot.slane %v470, %v755
        %v757 = vlaneseq
        %v758 = vshrl.u32 %v757, 7
        %v759 = vsub.s32 %v587, %v758
        %v760 = vrot.slane %v471, %v759
        %v761 = vsel %vm592, %v760, %v756
        %v762 = vlaneseq
        %v763 = vshrl.u32 %v762, 7
        %v764 = vsub.s32 %v594, %v763
        %v765 = vrot.slane %v472, %v764
        %v766 = vsel %vm599, %v765, %v761
        %v767 = vlaneseq
        %v768 = vshrl.u32 %v767, 7
        %v769 = vsub.s32 %v601, %v768
        %v770 = vrot.slane %v473, %v769
        %v771 = vsel %vm606, %v770, %v766
        %v772 = vlaneseq
        %v773 = vshrl.u32 %v772, 7
        %v774 = vsub.s32 %v608, %v773
        %v775 = vrot.slane %v474, %v774
        %v776 = vsel %vm613, %v775, %v771
        %v777 = vlaneseq
        %v778 = vshrl.u32 %v777, 7
        %v779 = vsub.s32 %v615, %v778
        %v780 = vrot.slane %v475, %v779
        %v781 = vsel %vm620, %v780, %v776
        %v782 = vlaneseq
        %v783 = vshrl.u32 %v782, 7
        %v784 = vsub.s32 %v622, %v783
        %v785 = vrot.slane %v476, %v784
        %v786 = vsel %vm627, %v785, %v781
        %v787 = vlaneseq
        %v788 = vshrl.u32 %v787, 7
        %v789 = vsub.s32 %v629, %v788
        %v790 = vrot.slane %v477, %v789
        %v791 = vsel %vm634, %v790, %v786
        %v792 = vlaneseq
        %v793 = vshrl.u32 %v792, 7
        %v794 = vsub.s32 %v582, %v793
        %v795 = vrot.slane %v478, %v794
        %v796 = vlaneseq
        %v797 = vshrl.u32 %v796, 7
        %v798 = vsub.s32 %v587, %v797
        %v799 = vrot.slane %v479, %v798
        %v800 = vsel %vm592, %v799, %v795
        %v801 = vlaneseq
        %v802 = vshrl.u32 %v801, 7
        %v803 = vsub.s32 %v594, %v802
        %v804 = vrot.slane %v480, %v803
        %v805 = vsel %vm599, %v804, %v800
        %v806 = vlaneseq
        %v807 = vshrl.u32 %v806, 7
        %v808 = vsub.s32 %v601, %v807
        %v809 = vrot.slane %v481, %v808
        %v810 = vsel %vm606, %v809, %v805
        %v811 = vlaneseq
        %v812 = vshrl.u32 %v811, 7
        %v813 = vsub.s32 %v608, %v812
        %v814 = vrot.slane %v482, %v813
        %v815 = vsel %vm613, %v814, %v810
        %v816 = vlaneseq
        %v817 = vshrl.u32 %v816, 7
        %v818 = vsub.s32 %v615, %v817
        %v819 = vrot.slane %v483, %v818
        %v820 = vsel %vm620, %v819, %v815
        %v821 = vlaneseq
        %v822 = vshrl.u32 %v821, 7
        %v823 = vsub.s32 %v622, %v822
        %v824 = vrot.slane %v484, %v823
        %v825 = vsel %vm627, %v824, %v820
        %v826 = vlaneseq
        %v827 = vshrl.u32 %v826, 7
        %v828 = vsub.s32 %v629, %v827
        %v829 = vrot.slane %v485, %v828
        %v830 = vsel %vm634, %v829, %v825
        %v831 = vlaneseq
        %v832 = vshrl.u32 %v831, 7
        %v833 = vsub.s32 %v582, %v832
        %v834 = vrot.slane %v486, %v833
        %v835 = vlaneseq
        %v836 = vshrl.u32 %v835, 7
        %v837 = vsub.s32 %v587, %v836
        %v838 = vrot.slane %v487, %v837
        %v839 = vsel %vm592, %v838, %v834
        %v840 = vlaneseq
        %v841 = vshrl.u32 %v840, 7
        %v842 = vsub.s32 %v594, %v841
        %v843 = vrot.slane %v488, %v842
        %v844 = vsel %vm599, %v843, %v839
        %v845 = vlaneseq
        %v846 = vshrl.u32 %v845, 7
        %v847 = vsub.s32 %v601, %v846
        %v848 = vrot.slane %v489, %v847
        %v849 = vsel %vm606, %v848, %v844
        %v850 = vlaneseq
        %v851 = vshrl.u32 %v850, 7
        %v852 = vsub.s32 %v608, %v851
        %v853 = vrot.slane %v490, %v852
        %v854 = vsel %vm613, %v853, %v849
        %v855 = vlaneseq
        %v856 = vshrl.u32 %v855, 7
        %v857 = vsub.s32 %v615, %v856
        %v858 = vrot.slane %v491, %v857
        %v859 = vsel %vm620, %v858, %v854
        %v860 = vlaneseq
        %v861 = vshrl.u32 %v860, 7
        %v862 = vsub.s32 %v622, %v861
        %v863 = vrot.slane %v492, %v862
        %v864 = vsel %vm627, %v863, %v859
        %v865 = vlaneseq
        %v866 = vshrl.u32 %v865, 7
        %v867 = vsub.s32 %v629, %v866
        %v868 = vrot.slane %v493, %v867
        %v869 = vsel %vm634, %v868, %v864
        %v870 = vlaneseq
        %v871 = vshrl.u32 %v870, 7
        %v872 = vsub.s32 %v582, %v871
        %v873 = vrot.slane %v494, %v872
        %v874 = vlaneseq
        %v875 = vshrl.u32 %v874, 7
        %v876 = vsub.s32 %v587, %v875
        %v877 = vrot.slane %v495, %v876
        %v878 = vsel %vm592, %v877, %v873
        %v879 = vlaneseq
        %v880 = vshrl.u32 %v879, 7
        %v881 = vsub.s32 %v594, %v880
        %v882 = vrot.slane %v496, %v881
        %v883 = vsel %vm599, %v882, %v878
        %v884 = vlaneseq
        %v885 = vshrl.u32 %v884, 7
        %v886 = vsub.s32 %v601, %v885
        %v887 = vrot.slane %v497, %v886
        %v888 = vsel %vm606, %v887, %v883
        %v889 = vlaneseq
        %v890 = vshrl.u32 %v889, 7
        %v891 = vsub.s32 %v608, %v890
        %v892 = vrot.slane %v498, %v891
        %v893 = vsel %vm613, %v892, %v888
        %v894 = vlaneseq
        %v895 = vshrl.u32 %v894, 7
        %v896 = vsub.s32 %v615, %v895
        %v897 = vrot.slane %v499, %v896
        %v898 = vsel %vm620, %v897, %v893
        %v899 = vlaneseq
        %v900 = vshrl.u32 %v899, 7
        %v901 = vsub.s32 %v622, %v900
        %v902 = vrot.slane %v500, %v901
        %v903 = vsel %vm627, %v902, %v898
        %v904 = vlaneseq
        %v905 = vshrl.u32 %v904, 7
        %v906 = vsub.s32 %v629, %v905
        %v907 = vrot.slane %v501, %v906
        %v908 = vsel %vm634, %v907, %v903
        %vm909 = vcmask 1041409
        %v910 = vsel %vm909, %v674, %v635
        %vm911 = vcmask 1042434
        %v912 = vsel %vm911, %v713, %v910
        %vm913 = vcmask 1043459
        %v914 = vsel %vm913, %v752, %v912
        %vm915 = vcmask 1044484
        %v916 = vsel %vm915, %v791, %v914
        %vm917 = vcmask 1045509
        %v918 = vsel %vm917, %v830, %v916
        %vm919 = vcmask 1046534
        %v920 = vsel %vm919, %v869, %v918
        %vm921 = vcmask 1047559
        %v922 = vsel %vm921, %v908, %v920
        %vm923 = vcmask 523264
        %v924 = vsel %vm923, %v922, 0
        %926 = vmatprep.subr.mxu0 0.0
        %927 = vmatpush1.msra.mxu0 %v502
        %928 = vmatprep.subr.mxu0 0.0
        %929 = vmatpush1.msra.mxu0 %v503
        %930 = vmatprep.subr.mxu0 0.0
        %931 = vmatpush1.msra.mxu0 %v504
        %932 = vmatprep.subr.mxu0 0.0
        %933 = vmatpush1.msra.mxu0 %v505
        %934 = vmatprep.subr.mxu0 0.0
        %935 = vmatpush1.msra.mxu0 %v506
        %936 = vmatprep.subr.mxu0 0.0
        %937 = vmatpush1.msra.mxu0 %v507
        %938 = vmatprep.subr.mxu0 0.0
        %939 = vmatpush1.msra.mxu0 %v508
        %940 = vmatprep.subr.mxu0 0.0
        %941 = vmatpush1.msra.mxu0 %v509
        %942 = vmatprep.subr.mxu0 0.0
        %943 = vmatpush1.msra.mxu0 0.0
        %944 = vmatprep.subr.mxu0 0.0
        %945 = vmatpush1.msra.mxu0 0.0
        %946 = vmatprep.subr.mxu0 0.0
        %947 = vmatpush1.msra.mxu0 0.0
        %948 = vmatprep.subr.mxu0 0.0
        %949 = vmatpush1.msra.mxu0 0.0
        %950 = vmatprep.subr.mxu0 0.0
        %951 = vmatpush1.msra.mxu0 0.0
        %952 = vmatprep.subr.mxu0 0.0
        %953 = vmatpush1.msra.mxu0 0.0
        %954 = vmatprep.subr.mxu0 0.0
        %955 = vmatpush1.msra.mxu0 0.0
        %956 = vmatprep.subr.mxu0 0.0
        %957 = vmatpush1.msra.mxu0 0.0
        %958 = vmatprep.subr.mxu0 0.0
        %959 = vmatpush1.msra.mxu0 0.0
        %960 = vmatprep.subr.mxu0 0.0
        %961 = vmatpush1.msra.mxu0 0.0
        %962 = vmatprep.subr.mxu0 0.0
        %963 = vmatpush1.msra.mxu0 0.0
        %964 = vmatprep.subr.mxu0 0.0
        %965 = vmatpush1.msra.mxu0 0.0
        %966 = vmatprep.subr.mxu0 0.0
        %967 = vmatpush1.msra.mxu0 0.0
        %968 = vmatprep.subr.mxu0 0.0
        %969 = vmatpush1.msra.mxu0 0.0
        %970 = vmatprep.subr.mxu0 0.0
        %971 = vmatpush1.msra.mxu0 0.0
        %972 = vmatprep.subr.mxu0 0.0
        %973 = vmatpush1.msra.mxu0 0.0
        %974 = vmatprep.subr.mxu0 0.0
        %975 = vmatpush1.msra.mxu0 0.0
        %976 = vmatprep.subr.mxu0 0.0
        %977 = vmatpush1.msra.mxu0 0.0
        %978 = vmatprep.subr.mxu0 0.0
        %979 = vmatpush1.msra.mxu0 0.0
        %980 = vmatprep.subr.mxu0 0.0
        %981 = vmatpush1.msra.mxu0 0.0
        %982 = vmatprep.subr.mxu0 0.0
        %983 = vmatpush1.msra.mxu0 0.0
        %984 = vmatprep.subr.mxu0 0.0
        %985 = vmatpush1.msra.mxu0 0.0
        %986 = vmatprep.subr.mxu0 0.0
        %987 = vmatpush1.msra.mxu0 0.0
        %988 = vmatprep.subr.mxu0 0.0
        %989 = vmatpush1.msra.mxu0 0.0
        %990 = vmatprep.mubr.f32.mxu0 0.0
        %991 = vmatmul.mubr.f32.gmra.mrb[0].mxu0 %v924
        %v992 = vpop.f32.mrb[0].mxu0
        %v993 = vadd.f32 %v515, %v992
        %v994 = vpop.f32.mrb[0].mxu0
        %995 = vdwg.mxu0
        %v996 = vmax.f32 %v993, 0.0
        %v997 = vld [vmem:[%s3] sm:$0xff]
        %v998 = vld [vmem:[%s3 + $0x8] sm:$0xff]
        %v999 = vld [vmem:[%s3 + $0x10] sm:$0xff]
        %v1000 = vld [vmem:[%s3 + $0x18] sm:$0xff]
        %v1001 = vld [vmem:[%s3 + $0x20] sm:$0xff]
        %v1002 = vld [vmem:[%s3 + $0x28] sm:$0xff]
        %v1003 = vld [vmem:[%s3 + $0x30] sm:$0xff]
        %v1004 = vld [vmem:[%s3 + $0x38] sm:$0xff]
        %v1005 = vld [vmem:[%s3 + $0x40] sm:$0xff]
        %v1006 = vld [vmem:[%s3 + $0x48] sm:$0xff]
        %v1007 = vld [vmem:[%s3 + $0x50] sm:$0xff]
        %v1008 = vld [vmem:[%s3 + $0x58] sm:$0xff]
        %v1009 = vld [vmem:[%s3 + $0x60] sm:$0xff]
        %v1010 = vld [vmem:[%s3 + $0x68] sm:$0xff]
        %v1011 = vld [vmem:[%s3 + $0x70] sm:$0xff]
        %v1012 = vld [vmem:[%s3 + $0x78] sm:$0xff]
        %v1013 = vld [vmem:[%s4] sm:$0x1]
        %v1015 = vlaneseq
        %v1016 = vshrl.u32 %v1015, 7
        %v1017 = vsub.s32 0, %v1016
        %v1018 = vrot.slane %v1013, %v1017
        %1020 = vmatprep.subr.mxu0 0.0
        %1021 = vmatpush1.msra.mxu0 %v997
        %1022 = vmatprep.subr.mxu0 0.0
        %1023 = vmatpush1.msra.mxu0 %v998
        %1024 = vmatprep.subr.mxu0 0.0
        %1025 = vmatpush1.msra.mxu0 %v999
        %1026 = vmatprep.subr.mxu0 0.0
        %1027 = vmatpush1.msra.mxu0 %v1000
        %1028 = vmatprep.subr.mxu0 0.0
        %1029 = vmatpush1.msra.mxu0 %v1001
        %1030 = vmatprep.subr.mxu0 0.0
        %1031 = vmatpush1.msra.mxu0 %v1002
        %1032 = vmatprep.subr.mxu0 0.0
        %1033 = vmatpush1.msra.mxu0 %v1003
        %1034 = vmatprep.subr.mxu0 0.0
        %1035 = vmatpush1.msra.mxu0 %v1004
        %1036 = vmatprep.subr.mxu0 0.0
        %1037 = vmatpush1.msra.mxu0 %v1005
        %1038 = vmatprep.subr.mxu0 0.0
        %1039 = vmatpush1.msra.mxu0 %v1006
        %1040 = vmatprep.subr.mxu0 0.0
        %1041 = vmatpush1.msra.mxu0 %v1007
        %1042 = vmatprep.subr.mxu0 0.0
        %1043 = vmatpush1.msra.mxu0 %v1008
        %1044 = vmatprep.subr.mxu0 0.0
        %1045 = vmatpush1.msra.mxu0 %v1009
        %1046 = vmatprep.subr.mxu0 0.0
        %1047 = vmatpush1.msra.mxu0 %v1010
        %1048 = vmatprep.subr.mxu0 0.0
        %1049 = vmatpush1.msra.mxu0 %v1011
        %1050 = vmatprep.subr.mxu0 0.0
        %1051 = vmatpush1.msra.mxu0 %v1012
        %1052 = vmatprep.subr.mxu0 0.0
        %1053 = vmatpush1.msra.mxu0 0.0
        %1054 = vmatprep.subr.mxu0 0.0
        %1055 = vmatpush1.msra.mxu0 0.0
        %1056 = vmatprep.subr.mxu0 0.0
        %1057 = vmatpush1.msra.mxu0 0.0
        %1058 = vmatprep.subr.mxu0 0.0
        %1059 = vmatpush1.msra.mxu0 0.0
        %1060 = vmatprep.subr.mxu0 0.0
        %1061 = vmatpush1.msra.mxu0 0.0
        %1062 = vmatprep.subr.mxu0 0.0
        %1063 = vmatpush1.msra.mxu0 0.0
        %1064 = vmatprep.subr.mxu0 0.0
        %1065 = vmatpush1.msra.mxu0 0.0
        %1066 = vmatprep.subr.mxu0 0.0
        %1067 = vmatpush1.msra.mxu0 0.0
        %1068 = vmatprep.subr.mxu0 0.0
        %1069 = vmatpush1.msra.mxu0 0.0
        %1070 = vmatprep.subr.mxu0 0.0
        %1071 = vmatpush1.msra.mxu0 0.0
        %1072 = vmatprep.subr.mxu0 0.0
        %1073 = vmatpush1.msra.mxu0 0.0
        %1074 = vmatprep.subr.mxu0 0.0
        %1075 = vmatpush1.msra.mxu0 0.0
        %1076 = vmatprep.subr.mxu0 0.0
        %1077 = vmatpush1.msra.mxu0 0.0
        %1078 = vmatprep.subr.mxu0 0.0
        %1079 = vmatpush1.msra.mxu0 0.0
        %1080 = vmatprep.subr.mxu0 0.0
        %1081 = vmatpush1.msra.mxu0 0.0
        %1082 = vmatprep.subr.mxu0 0.0
        %1083 = vmatpush1.msra.mxu0 0.0
        %1084 = vmatprep.mubr.f32.mxu0 0.0
        %1085 = vmatmul.mubr.f32.gmra.mrb[0].mxu0 %v996
        %v1086 = vpop.f32.mrb[0].mxu0
        %v1087 = vadd.f32 %v1018, %v1086
        %v1088 = vpop.f32.mrb[0].mxu0
        %1089 = vdwg.mxu0
        %v1090 = vxor.u32 %v1087, 2147483648
        %v1091 = vmul.f32 %v1090, 1.442695
        %v1092 = vpow.pop %v1091
        %v1093 = vadd.f32 %v1092, 1.0
        %v1094 = vrcp.pop %v1093
        %v1095 = vmul.f32 1.0, %v1094
        %v1096 = vlaneseq
        %v1097 = vshrl.u32 %v1096, 7
        %v1098 = vsub.s32 0, %v1097
        %v1099 = vrot.slane %v1095, %v1098
        %1101 = vbcast.lane.b32.xlu0 %v1099, 256
        %v1102 = vpop.permute.xlu0 %1101
        %s1104 = sor.u32 256, 8
        %1105 = vbcast.lane.b32.xlu0 %v1099, %s1104
        %v1106 = vpop.permute.xlu0 %1105
        %s1108 = sor.u32 256, 16
        %1109 = vbcast.lane.b32.xlu0 %v1099, %s1108
        %v1110 = vpop.permute.xlu0 %1109
        %s1112 = sor.u32 256, 24
        %1113 = vbcast.lane.b32.xlu0 %v1099, %s1112
        %v1114 = vpop.permute.xlu0 %1113
        %s1116 = sor.u32 256, 32
        %1117 = vbcast.lane.b32.xlu0 %v1099, %s1116
        %v1118 = vpop.permute.xlu0 %1117
        %s1120 = sor.u32 256, 40
        %1121 = vbcast.lane.b32.xlu0 %v1099, %s1120
        %v1122 = vpop.permute.xlu0 %1121
        %s1124 = sor.u32 256, 48
        %1125 = vbcast.lane.b32.xlu0 %v1099, %s1124
        %v1126 = vpop.permute.xlu0 %1125
        %s1128 = sor.u32 256, 56
        %1129 = vbcast.lane.b32.xlu0 %v1099, %s1128
        %v1130 = vpop.permute.xlu0 %1129
        %v1131 = vlaneseq
        %v1132 = vshrl.u32 %v1131, 7
        %v1133 = vsub.s32 1, %v1132
        %v1134 = vrot.slane %v1095, %v1133
        %1136 = vbcast.lane.b32.xlu0 %v1134, 256
        %v1137 = vpop.permute.xlu0 %1136
        %s1139 = sor.u32 256, 8
        %1140 = vbcast.lane.b32.xlu0 %v1134, %s1139
        %v1141 = vpop.permute.xlu0 %1140
        %s1143 = sor.u32 256, 16
        %1144 = vbcast.lane.b32.xlu0 %v1134, %s1143
        %v1145 = vpop.permute.xlu0 %1144
        %s1147 = sor.u32 256, 24
        %1148 = vbcast.lane.b32.xlu0 %v1134, %s1147
        %v1149 = vpop.permute.xlu0 %1148
        %s1151 = sor.u32 256, 32
        %1152 = vbcast.lane.b32.xlu0 %v1134, %s1151
        %v1153 = vpop.permute.xlu0 %1152
        %s1155 = sor.u32 256, 40
        %1156 = vbcast.lane.b32.xlu0 %v1134, %s1155
        %v1157 = vpop.permute.xlu0 %1156
        %s1159 = sor.u32 256, 48
        %1160 = vbcast.lane.b32.xlu0 %v1134, %s1159
        %v1161 = vpop.permute.xlu0 %1160
        %s1163 = sor.u32 256, 56
        %1164 = vbcast.lane.b32.xlu0 %v1134, %s1163
        %v1165 = vpop.permute.xlu0 %1164
        %v1166 = vlaneseq
        %v1167 = vshrl.u32 %v1166, 7
        %v1168 = vsub.s32 2, %v1167
        %v1169 = vrot.slane %v1095, %v1168
        %1171 = vbcast.lane.b32.xlu0 %v1169, 256
        %v1172 = vpop.permute.xlu0 %1171
        %s1174 = sor.u32 256, 8
        %1175 = vbcast.lane.b32.xlu0 %v1169, %s1174
        %v1176 = vpop.permute.xlu0 %1175
        %s1178 = sor.u32 256, 16
        %1179 = vbcast.lane.b32.xlu0 %v1169, %s1178
        %v1180 = vpop.permute.xlu0 %1179
        %s1182 = sor.u32 256, 24
        %1183 = vbcast.lane.b32.xlu0 %v1169, %s1182
        %v1184 = vpop.permute.xlu0 %1183
        %s1186 = sor.u32 256, 32
        %1187 = vbcast.lane.b32.xlu0 %v1169, %s1186
        %v1188 = vpop.permute.xlu0 %1187
        %s1190 = sor.u32 256, 40
        %1191 = vbcast.lane.b32.xlu0 %v1169, %s1190
        %v1192 = vpop.permute.xlu0 %1191
        %s1194 = sor.u32 256, 48
        %1195 = vbcast.lane.b32.xlu0 %v1169, %s1194
        %v1196 = vpop.permute.xlu0 %1195
        %s1198 = sor.u32 256, 56
        %1199 = vbcast.lane.b32.xlu0 %v1169, %s1198
        %v1200 = vpop.permute.xlu0 %1199
        %v1201 = vlaneseq
        %v1202 = vshrl.u32 %v1201, 7
        %v1203 = vsub.s32 3, %v1202
        %v1204 = vrot.slane %v1095, %v1203
        %1206 = vbcast.lane.b32.xlu0 %v1204, 256
        %v1207 = vpop.permute.xlu0 %1206
        %s1209 = sor.u32 256, 8
        %1210 = vbcast.lane.b32.xlu0 %v1204, %s1209
        %v1211 = vpop.permute.xlu0 %1210
        %s1213 = sor.u32 256, 16
        %1214 = vbcast.lane.b32.xlu0 %v1204, %s1213
        %v1215 = vpop.permute.xlu0 %1214
        %s1217 = sor.u32 256, 24
        %1218 = vbcast.lane.b32.xlu0 %v1204, %s1217
        %v1219 = vpop.permute.xlu0 %1218
        %s1221 = sor.u32 256, 32
        %1222 = vbcast.lane.b32.xlu0 %v1204, %s1221
        %v1223 = vpop.permute.xlu0 %1222
        %s1225 = sor.u32 256, 40
        %1226 = vbcast.lane.b32.xlu0 %v1204, %s1225
        %v1227 = vpop.permute.xlu0 %1226
        %s1229 = sor.u32 256, 48
        %1230 = vbcast.lane.b32.xlu0 %v1204, %s1229
        %v1231 = vpop.permute.xlu0 %1230
        %s1233 = sor.u32 256, 56
        %1234 = vbcast.lane.b32.xlu0 %v1204, %s1233
        %v1235 = vpop.permute.xlu0 %1234
        %v1236 = vlaneseq
        %v1237 = vshrl.u32 %v1236, 7
        %v1238 = vsub.s32 4, %v1237
        %v1239 = vrot.slane %v1095, %v1238
        %1241 = vbcast.lane.b32.xlu0 %v1239, 256
        %v1242 = vpop.permute.xlu0 %1241
        %s1244 = sor.u32 256, 8
        %1245 = vbcast.lane.b32.xlu0 %v1239, %s1244
        %v1246 = vpop.permute.xlu0 %1245
        %s1248 = sor.u32 256, 16
        %1249 = vbcast.lane.b32.xlu0 %v1239, %s1248
        %v1250 = vpop.permute.xlu0 %1249
        %s1252 = sor.u32 256, 24
        %1253 = vbcast.lane.b32.xlu0 %v1239, %s1252
        %v1254 = vpop.permute.xlu0 %1253
        %s1256 = sor.u32 256, 32
        %1257 = vbcast.lane.b32.xlu0 %v1239, %s1256
        %v1258 = vpop.permute.xlu0 %1257
        %s1260 = sor.u32 256, 40
        %1261 = vbcast.lane.b32.xlu0 %v1239, %s1260
        %v1262 = vpop.permute.xlu0 %1261
        %s1264 = sor.u32 256, 48
        %1265 = vbcast.lane.b32.xlu0 %v1239, %s1264
        %v1266 = vpop.permute.xlu0 %1265
        %s1268 = sor.u32 256, 56
        %1269 = vbcast.lane.b32.xlu0 %v1239, %s1268
        %v1270 = vpop.permute.xlu0 %1269
        %v1271 = vlaneseq
        %v1272 = vshrl.u32 %v1271, 7
        %v1273 = vsub.s32 5, %v1272
        %v1274 = vrot.slane %v1095, %v1273
        %1276 = vbcast.lane.b32.xlu0 %v1274, 256
        %v1277 = vpop.permute.xlu0 %1276
        %s1279 = sor.u32 256, 8
        %1280 = vbcast.lane.b32.xlu0 %v1274, %s1279
        %v1281 = vpop.permute.xlu0 %1280
        %s1283 = sor.u32 256, 16
        %1284 = vbcast.lane.b32.xlu0 %v1274, %s1283
        %v1285 = vpop.permute.xlu0 %1284
        %s1287 = sor.u32 256, 24
        %1288 = vbcast.lane.b32.xlu0 %v1274, %s1287
        %v1289 = vpop.permute.xlu0 %1288
        %s1291 = sor.u32 256, 32
        %1292 = vbcast.lane.b32.xlu0 %v1274, %s1291
        %v1293 = vpop.permute.xlu0 %1292
        %s1295 = sor.u32 256, 40
        %1296 = vbcast.lane.b32.xlu0 %v1274, %s1295
        %v1297 = vpop.permute.xlu0 %1296
        %s1299 = sor.u32 256, 48
        %1300 = vbcast.lane.b32.xlu0 %v1274, %s1299
        %v1301 = vpop.permute.xlu0 %1300
        %s1303 = sor.u32 256, 56
        %1304 = vbcast.lane.b32.xlu0 %v1274, %s1303
        %v1305 = vpop.permute.xlu0 %1304
        %v1306 = vlaneseq
        %v1307 = vshrl.u32 %v1306, 7
        %v1308 = vsub.s32 6, %v1307
        %v1309 = vrot.slane %v1095, %v1308
        %1311 = vbcast.lane.b32.xlu0 %v1309, 256
        %v1312 = vpop.permute.xlu0 %1311
        %s1314 = sor.u32 256, 8
        %1315 = vbcast.lane.b32.xlu0 %v1309, %s1314
        %v1316 = vpop.permute.xlu0 %1315
        %s1318 = sor.u32 256, 16
        %1319 = vbcast.lane.b32.xlu0 %v1309, %s1318
        %v1320 = vpop.permute.xlu0 %1319
        %s1322 = sor.u32 256, 24
        %1323 = vbcast.lane.b32.xlu0 %v1309, %s1322
        %v1324 = vpop.permute.xlu0 %1323
        %s1326 = sor.u32 256, 32
        %1327 = vbcast.lane.b32.xlu0 %v1309, %s1326
        %v1328 = vpop.permute.xlu0 %1327
        %s1330 = sor.u32 256, 40
        %1331 = vbcast.lane.b32.xlu0 %v1309, %s1330
        %v1332 = vpop.permute.xlu0 %1331
        %s1334 = sor.u32 256, 48
        %1335 = vbcast.lane.b32.xlu0 %v1309, %s1334
        %v1336 = vpop.permute.xlu0 %1335
        %s1338 = sor.u32 256, 56
        %1339 = vbcast.lane.b32.xlu0 %v1309, %s1338
        %v1340 = vpop.permute.xlu0 %1339
        %v1341 = vlaneseq
        %v1342 = vshrl.u32 %v1341, 7
        %v1343 = vsub.s32 7, %v1342
        %v1344 = vrot.slane %v1095, %v1343
        %1346 = vbcast.lane.b32.xlu0 %v1344, 256
        %v1347 = vpop.permute.xlu0 %1346
        %s1349 = sor.u32 256, 8
        %1350 = vbcast.lane.b32.xlu0 %v1344, %s1349
        %v1351 = vpop.permute.xlu0 %1350
        %s1353 = sor.u32 256, 16
        %1354 = vbcast.lane.b32.xlu0 %v1344, %s1353
        %v1355 = vpop.permute.xlu0 %1354
        %s1357 = sor.u32 256, 24
        %1358 = vbcast.lane.b32.xlu0 %v1344, %s1357
        %v1359 = vpop.permute.xlu0 %1358
        %s1361 = sor.u32 256, 32
        %1362 = vbcast.lane.b32.xlu0 %v1344, %s1361
        %v1363 = vpop.permute.xlu0 %1362
        %s1365 = sor.u32 256, 40
        %1366 = vbcast.lane.b32.xlu0 %v1344, %s1365
        %v1367 = vpop.permute.xlu0 %1366
        %s1369 = sor.u32 256, 48
        %1370 = vbcast.lane.b32.xlu0 %v1344, %s1369
        %v1371 = vpop.permute.xlu0 %1370
        %s1373 = sor.u32 256, 56
        %1374 = vbcast.lane.b32.xlu0 %v1344, %s1373
        %v1375 = vpop.permute.xlu0 %1374
        %v1376 = vmul.f32 %v246, %v1102
        %v1377 = vmul.f32 %v247, %v1106
        %v1378 = vmul.f32 %v248, %v1110
        %v1379 = vmul.f32 %v249, %v1114
        %v1380 = vmul.f32 %v250, %v1118
        %v1381 = vmul.f32 %v251, %v1122
        %v1382 = vmul.f32 %v252, %v1126
        %v1383 = vmul.f32 %v253, %v1130
        %v1384 = vmul.f32 %v254, %v1137
        %v1385 = vmul.f32 %v255, %v1141
        %v1386 = vmul.f32 %v256, %v1145
        %v1387 = vmul.f32 %v257, %v1149
        %v1388 = vmul.f32 %v258, %v1153
        %v1389 = vmul.f32 %v259, %v1157
        %v1390 = vmul.f32 %v260, %v1161
        %v1391 = vmul.f32 %v261, %v1165
        %v1392 = vmul.f32 %v262, %v1172
        %v1393 = vmul.f32 %v263, %v1176
        %v1394 = vmul.f32 %v264, %v1180
        %v1395 = vmul.f32 %v265, %v1184
        %v1396 = vmul.f32 %v266, %v1188
        %v1397 = vmul.f32 %v267, %v1192
        %v1398 = vmul.f32 %v268, %v1196
        %v1399 = vmul.f32 %v269, %v1200
        %v1400 = vmul.f32 %v270, %v1207
        %v1401 = vmul.f32 %v271, %v1211
        %v1402 = vmul.f32 %v272, %v1215
        %v1403 = vmul.f32 %v273, %v1219
        %v1404 = vmul.f32 %v274, %v1223
        %v1405 = vmul.f32 %v275, %v1227
        %v1406 = vmul.f32 %v276, %v1231
        %v1407 = vmul.f32 %v277, %v1235
        %v1408 = vmul.f32 %v278, %v1242
        %v1409 = vmul.f32 %v279, %v1246
        %v1410 = vmul.f32 %v280, %v1250
        %v1411 = vmul.f32 %v281, %v1254
        %v1412 = vmul.f32 %v282, %v1258
        %v1413 = vmul.f32 %v283, %v1262
        %v1414 = vmul.f32 %v284, %v1266
        %v1415 = vmul.f32 %v285, %v1270
        %v1416 = vmul.f32 %v286, %v1277
        %v1417 = vmul.f32 %v287, %v1281
        %v1418 = vmul.f32 %v288, %v1285
        %v1419 = vmul.f32 %v289, %v1289
        %v1420 = vmul.f32 %v290, %v1293
        %v1421 = vmul.f32 %v291, %v1297
        %v1422 = vmul.f32 %v292, %v1301
        %v1423 = vmul.f32 %v293, %v1305
        %v1424 = vmul.f32 %v294, %v1312
        %v1425 = vmul.f32 %v295, %v1316
        %v1426 = vmul.f32 %v296, %v1320
        %v1427 = vmul.f32 %v297, %v1324
        %v1428 = vmul.f32 %v298, %v1328
        %v1429 = vmul.f32 %v299, %v1332
        %v1430 = vmul.f32 %v300, %v1336
        %v1431 = vmul.f32 %v301, %v1340
        %v1432 = vmul.f32 %v302, %v1347
        %v1433 = vmul.f32 %v303, %v1351
        %v1434 = vmul.f32 %v304, %v1355
        %v1435 = vmul.f32 %v305, %v1359
        %v1436 = vmul.f32 %v306, %v1363
        %v1437 = vmul.f32 %v307, %v1367
        %v1438 = vmul.f32 %v308, %v1371
        %v1439 = vmul.f32 %v309, %v1375
        %1440 = vst [vmem:[%s243] sm:$0xff] %v1376
        %1441 = vst [vmem:[%s243 + $0x8] sm:$0xff] %v1377
        %1442 = vst [vmem:[%s243 + $0x10] sm:$0xff] %v1378
        %1443 = vst [vmem:[%s243 + $0x18] sm:$0xff] %v1379
        %1444 = vst [vmem:[%s243 + $0x20] sm:$0xff] %v1380
        %1445 = vst [vmem:[%s243 + $0x28] sm:$0xff] %v1381
        %1446 = vst [vmem:[%s243 + $0x30] sm:$0xff] %v1382
        %1447 = vst [vmem:[%s243 + $0x38] sm:$0xff] %v1383
        %1448 = vst [vmem:[%s243 + $0x40] sm:$0xff] %v1384
        %1449 = vst [vmem:[%s243 + $0x48] sm:$0xff] %v1385
        %1450 = vst [vmem:[%s243 + $0x50] sm:$0xff] %v1386
        %1451 = vst [vmem:[%s243 + $0x58] sm:$0xff] %v1387
        %1452 = vst [vmem:[%s243 + $0x60] sm:$0xff] %v1388
        %1453 = vst [vmem:[%s243 + $0x68] sm:$0xff] %v1389
        %1454 = vst [vmem:[%s243 + $0x70] sm:$0xff] %v1390
        %1455 = vst [vmem:[%s243 + $0x78] sm:$0xff] %v1391
        %1456 = vst [vmem:[%s243 + $0x80] sm:$0xff] %v1392
        %1457 = vst [vmem:[%s243 + $0x88] sm:$0xff] %v1393
        %1458 = vst [vmem:[%s243 + $0x90] sm:$0xff] %v1394
        %1459 = vst [vmem:[%s243 + $0x98] sm:$0xff] %v1395
        %1460 = vst [vmem:[%s243 + $0xa0] sm:$0xff] %v1396
        %1461 = vst [vmem:[%s243 + $0xa8] sm:$0xff] %v1397
        %1462 = vst [vmem:[%s243 + $0xb0] sm:$0xff] %v1398
        %1463 = vst [vmem:[%s243 + $0xb8] sm:$0xff] %v1399
        %1464 = vst [vmem:[%s243 + $0xc0] sm:$0xff] %v1400
        %1465 = vst [vmem:[%s243 + $0xc8] sm:$0xff] %v1401
        %1466 = vst [vmem:[%s243 + $0xd0] sm:$0xff] %v1402
        %1467 = vst [vmem:[%s243 + $0xd8] sm:$0xff] %v1403
        %1468 = vst [vmem:[%s243 + $0xe0] sm:$0xff] %v1404
        %1469 = vst [vmem:[%s243 + $0xe8] sm:$0xff] %v1405
        %1470 = vst [vmem:[%s243 + $0xf0] sm:$0xff] %v1406
        %1471 = vst [vmem:[%s243 + $0xf8] sm:$0xff] %v1407
        %1472 = vst [vmem:[%s243 + $0x100] sm:$0xff] %v1408
        %1473 = vst [vmem:[%s243 + $0x108] sm:$0xff] %v1409
        %1474 = vst [vmem:[%s243 + $0x110] sm:$0xff] %v1410
        %1475 = vst [vmem:[%s243 + $0x118] sm:$0xff] %v1411
        %1476 = vst [vmem:[%s243 + $0x120] sm:$0xff] %v1412
        %1477 = vst [vmem:[%s243 + $0x128] sm:$0xff] %v1413
        %1478 = vst [vmem:[%s243 + $0x130] sm:$0xff] %v1414
        %1479 = vst [vmem:[%s243 + $0x138] sm:$0xff] %v1415
        %1480 = vst [vmem:[%s243 + $0x140] sm:$0xff] %v1416
        %1481 = vst [vmem:[%s243 + $0x148] sm:$0xff] %v1417
        %1482 = vst [vmem:[%s243 + $0x150] sm:$0xff] %v1418
        %1483 = vst [vmem:[%s243 + $0x158] sm:$0xff] %v1419
        %1484 = vst [vmem:[%s243 + $0x160] sm:$0xff] %v1420
        %1485 = vst [vmem:[%s243 + $0x168] sm:$0xff] %v1421
        %1486 = vst [vmem:[%s243 + $0x170] sm:$0xff] %v1422
        %1487 = vst [vmem:[%s243 + $0x178] sm:$0xff] %v1423
        %1488 = vst [vmem:[%s243 + $0x180] sm:$0xff] %v1424
        %1489 = vst [vmem:[%s243 + $0x188] sm:$0xff] %v1425
        %1490 = vst [vmem:[%s243 + $0x190] sm:$0xff] %v1426
        %1491 = vst [vmem:[%s243 + $0x198] sm:$0xff] %v1427
        %1492 = vst [vmem:[%s243 + $0x1a0] sm:$0xff] %v1428
        %1493 = vst [vmem:[%s243 + $0x1a8] sm:$0xff] %v1429
        %1494 = vst [vmem:[%s243 + $0x1b0] sm:$0xff] %v1430
        %1495 = vst [vmem:[%s243 + $0x1b8] sm:$0xff] %v1431
        %1496 = vst [vmem:[%s243 + $0x1c0] sm:$0xff] %v1432
        %1497 = vst [vmem:[%s243 + $0x1c8] sm:$0xff] %v1433
        %1498 = vst [vmem:[%s243 + $0x1d0] sm:$0xff] %v1434
        %1499 = vst [vmem:[%s243 + $0x1d8] sm:$0xff] %v1435
        %1500 = vst [vmem:[%s243 + $0x1e0] sm:$0xff] %v1436
        %1501 = vst [vmem:[%s243 + $0x1e8] sm:$0xff] %v1437
        %1502 = vst [vmem:[%s243 + $0x1f0] sm:$0xff] %v1438
        %1503 = vst [vmem:[%s243 + $0x1f8] sm:$0xff] %v1439
        %s1504 = sand.u32 %s140, 1
        %s1505 = scalar_lea.sflag [#allocation4], %s1504
        %s1506 = sand.u32 %s140, 1
        %s1507 = smul.addr %s1506, 512
        %s1508 = scalar_lea.vmem [#allocation5], %s1507
        // Predicated region
        $region45: #{tpu_custom_call.1} parent=39 // pred_check
          %p1509 = pneg %p150
        $region46: #{tpu_custom_call.1} parent=39 // pred_check_branch
          %1511 = sbr.rel (%p1509) target = $region48
        $region47: #{tpu_custom_call.1} parent=39 // pred_region
          %s1512 = smul.u32 8, %s22
          %s1514 = ssub.s32 8192, 8192
          %1515 = vsyncadd %s1505, %s1514
          %s1516 = smul.addr %s1512, 8
          %s1517 = smul.addr %s1516, 128
          %s1518 = scalar_lea.hbm %s5, %s1517
          %s1519 = sshll.u32 %s1508, 4
          %s1520 = int_to_ptr.vmem [resolvable:$true] %s1519
          %1525 = dma.vmem_to_hbm [thread:$0]  %s1520, 8192, %s1518, %s1505, 128, 128, 8
        $region48: #{tpu_custom_call.1} parent=39 // pred_fallthru
          _
      $region40: #{tpu_custom_call.1} parent=5 // pred_fallthru
        _
      %p1526 = scmp.le.s32.totalorder 2, %s17
      // Predicated region
      $region49: #{tpu_custom_call.1} parent=5 // pred_check
        %p1527 = pneg %p1526
      $region50: #{tpu_custom_call.1} parent=5 // pred_check_branch
        %1529 = sbr.rel (%p1527) target = $region52
      $region51: #{tpu_custom_call.1} parent=5 // pred_region
        %s1530 = ssub.s32 %s17, 2
        // Predicated region
        $region53: #{tpu_custom_call.1} parent=51 // pred_check
          %p1531 = pneg %p156
        $region54: #{tpu_custom_call.1} parent=51 // pred_check_branch
          %1533 = sbr.rel (%p1531) target = $region56
        $region55: #{tpu_custom_call.1} parent=51 // pred_region
          %s1534 = sand.u32 %s141, 1
          %s1535 = scalar_lea.sflag [#allocation4], %s1534
          %s1536 = sand.u32 %s141, 1
          %s1537 = smul.addr %s1536, 512
          %s1538 = scalar_lea.vmem [#allocation5], %s1537
          %1539 = dma.done %s1535, 8192
        $region56: #{tpu_custom_call.1} parent=51 // pred_fallthru
          _
      $region52: #{tpu_custom_call.1} parent=5 // pred_fallthru
        _
    $region6: #{tpu_custom_call.1} parent=1 // loop_footer
      %s21 = sadd.s32 1, %s17
    $region7: #{tpu_custom_call.1} parent=1 // loop_footer_branch
      %16 = sbr.rel target = $region3
    $region8: #{tpu_custom_call.1} parent=1 // loop_exit
      _
    %1540 = vsyncpa [#allocation3], 1
    %s1541 = scalar_lea.sflag [#allocation3], 1
    %1542 = vsyncpa %s1541, 1
    %1543 = vsyncpa [#allocation4], 1
    %s1544 = scalar_lea.sflag [#allocation4], 1
    %1545 = vsyncpa %s1544, 1

</llo_original>
